<compile_context>
chip_gen: v5e
topology: v5e:2x2
jax: 0.10.0
libtpu: 0.0.40
codegen_flags: <defaults>
</compile_context>

<pallas_src>
import numpy as np

import jax
import jax.numpy as jnp
from jax.experimental import pallas as pl
from jax.experimental.pallas import tpu as pltpu


def _round_up(x, m):
    return (x + m - 1) // m * m


# ------------------------------- fused kernel -------------------------------

def _game_net_kernel(x_ref,
                     m1_ref, b1_ref, m2_ref, b2_ref, m3_ref, b3_ref,
                     w1_ref, c1_ref, w2_ref, c2_ref, w3_ref, c3_ref,
                     out_ref, e1_ref):
    """Whole Game_Net forward for one batch tile (TB rows).

    All weights are bf16, biases f32.  Matmuls accumulate in f32 on the MXU;
    elementwise math (bias add / max-pool / ReLU) stays f32.
    """

    def mm(a, w_ref):
        return jnp.dot(a.astype(jnp.bfloat16), w_ref[...],
                       preferred_element_type=jnp.float32)

    def pool4(y):
        # y: (TB, 512) = four 128-lane slabs, one per 2x2 pooling offset.
        return jnp.maximum(jnp.maximum(y[:, 0:128], y[:, 128:256]),
                           jnp.maximum(y[:, 256:384], y[:, 384:512]))

    x = x_ref[...]                                                  # (TB, 64) f32

    # conv1 (5x5, pad 2) + ReLU               -> (TB, 256), lane = c*64 + h*8 + w
    h = jnp.maximum(mm(x, m1_ref) + b1_ref[...], 0.0)

    # conv2 (3x3, pad 1) -> maxpool 2x2 -> ReLU -> (TB, 128), lane = c*16 + h*4 + w
    h = jnp.maximum(pool4(mm(h, m2_ref)) + b2_ref[...], 0.0)

    # conv3 (3x3, pad 1) -> Dropout2d (identity at inference) -> maxpool -> ReLU
    # -> (TB, 128); lanes [:64] = torch's x.view(-1, 64) order, lanes [64:] == 0.
    h = jnp.maximum(pool4(mm(h, m3_ref)) + b3_ref[...], 0.0)

    # fc1 + ReLU  -> (TB, 400)
    h = jnp.maximum(mm(h, w1_ref) + c1_ref[...], 0.0)

    # fc2 + ReLU  -> (TB, 128); lanes [:50] = e1, rest 0 (lane-dense store)
    e1 = jnp.maximum(mm(h, w2_ref) + c2_ref[...], 0.0)
    e1_ref[...] = e1

    # F.dropout (identity at inference) -> fc3 -> (TB, 128); lanes [:2] = logits
    out_ref[...] = mm(e1, w3_ref) + c3_ref[...]


# --------------------- one-time parameter preprocessing ----------------------

def _conv_dense(w, H, W, pad):
    """Dense per-sample matrix of a stride-1 'same' conv on a fixed HxW map.

    w: (Co, Ci, K, K).  Returns M of shape (Ci*H*W, Co*H*W) such that
    (x_flat @ M) equals conv2d(x, w) flattened in (co, h, w) order, where
    x_flat is the (ci, h, w)-flattened input.
    """
    Ci = w.shape[1]
    eye = jnp.eye(Ci * H * W, dtype=jnp.float32).reshape(Ci * H * W, Ci, H, W)
    y = jax.lax.conv_general_dilated(
        eye, w.astype(jnp.float32), window_strides=(1, 1),
        padding=[(pad, pad), (pad, pad)],
        dimension_numbers=("NCHW", "OIHW", "NCHW"))
    return y.reshape(Ci * H * W, Co_out(y))


def Co_out(y):
    return y.shape[1] * y.shape[2] * y.shape[3]


def _pool_perm(Co, H, W):
    """Column permutation mapping (co,h,w)-flat conv output into four 128-lane
    pooling-offset slabs; within a slab the lane is co*(H/2)*(W/2)+ph*(W/2)+pw."""
    Hp, Wp = H // 2, W // 2
    wc = Co * Hp * Wp                      # used lanes per slab (<= 128)
    src, dst = [], []
    for off in range(4):
        dy, dx = off // 2, off % 2
        for c in range(Co):
            for ph in range(Hp):
                for pw in range(Wp):
                    src.append(c * H * W + (2 * ph + dy) * W + (2 * pw + dx))
                    dst.append(off * 128 + c * Hp * Wp + ph * Wp + pw)
    return np.array(src), np.array(dst), wc


def prepare_params(params):
    """Lower PyTorch-layout weights to the kernel's dense/padded/bf16 form (once)."""
    # conv1: 1x8x8 -> 4x8x8  ==> dense (64, 256), output lane = c*64 + h*8 + w.
    m1 = _conv_dense(params["conv1_w"], 8, 8, 2)
    b1 = jnp.repeat(params["conv1_b"], 64).reshape(1, 256)

    # conv2 + 2x2 maxpool: 4x8x8 -> 8x8x8 -> 8x4x4  ==> dense (256, 4*128 slabs).
    m2f = _conv_dense(params["conv2_w"], 8, 8, 1)                  # (256, 512)
    src, dst, wc2 = _pool_perm(8, 8, 8)
    m2 = jnp.zeros((256, 512), jnp.float32).at[:, dst].set(m2f[:, src])
    b2 = jnp.zeros((128,), jnp.float32).at[:wc2].set(
        jnp.repeat(params["conv2_b"], 16)).reshape(1, 128)

    # conv3 + 2x2 maxpool: 8x4x4 -> 16x4x4 -> 16x2x2 ==> dense (128, 4*128 slabs).
    m3f = _conv_dense(params["conv3_w"], 4, 4, 1)                  # (128, 256)
    src, dst, wc3 = _pool_perm(16, 4, 4)
    m3 = jnp.zeros((128, 512), jnp.float32).at[:, dst].set(m3f[:, src])
    b3 = jnp.zeros((128,), jnp.float32).at[:wc3].set(
        jnp.repeat(params["conv3_b"], 4)).reshape(1, 128)

    # fc1 (64->400): input lanes padded to 128 (extra lanes are exactly zero).
    w1 = jnp.zeros((128, 400), jnp.float32).at[:64, :].set(params["fc1_w"].T)
    c1 = params["fc1_b"].reshape(1, 400)
    # fc2 (400->50): output lanes padded to 128.
    w2 = jnp.zeros((400, 128), jnp.float32).at[:, :50].set(params["fc2_w"].T)
    c2 = jnp.zeros((128,), jnp.float32).at[:50].set(params["fc2_b"]).reshape(1, 128)
    # fc3 (50->2): padded to (128, 128); logits land in lanes [:2].
    w3 = jnp.zeros((128, 128), jnp.float32).at[:50, :2].set(params["fc3_w"].T)
    c3 = jnp.zeros((128,), jnp.float32).at[:2].set(params["fc3_b"]).reshape(1, 128)

    bf16 = lambda a: a.astype(jnp.bfloat16)
    return {"m1": bf16(m1), "b1": b1, "m2": bf16(m2), "b2": b2,
            "m3": bf16(m3), "b3": b3,
            "w1": bf16(w1), "c1": c1, "w2": bf16(w2), "c2": c2,
            "w3": bf16(w3), "c3": c3}


# ------------------------------- parameters ----------------------------------

def init_params(key):
    def uinit(k, shape, fan_in):
        bound = float(fan_in) ** -0.5
        return jax.random.uniform(k, shape, jnp.float32, -bound, bound)

    ks = jax.random.split(key, 12)
    return {
        "conv1_w": uinit(ks[0], (4, 1, 5, 5), 1 * 5 * 5),
        "conv1_b": uinit(ks[1], (4,), 1 * 5 * 5),
        "conv2_w": uinit(ks[2], (8, 4, 3, 3), 4 * 3 * 3),
        "conv2_b": uinit(ks[3], (8,), 4 * 3 * 3),
        "conv3_w": uinit(ks[4], (16, 8, 3, 3), 8 * 3 * 3),
        "conv3_b": uinit(ks[5], (16,), 8 * 3 * 3),
        "fc1_w": uinit(ks[6], (400, 64), 64),     # PyTorch Linear: (out, in)
        "fc1_b": uinit(ks[7], (400,), 64),
        "fc2_w": uinit(ks[8], (50, 400), 400),
        "fc2_b": uinit(ks[9], (50,), 400),
        "fc3_w": uinit(ks[10], (2, 50), 50),
        "fc3_b": uinit(ks[11], (2,), 50),
    }


# --------------------------------- forward -----------------------------------

def game_net_forward(prep, x_nchw, *, block_rows=512):
    N = x_nchw.shape[0]
    x = x_nchw.reshape(N, 64).astype(jnp.float32)      # (h*8 + w) per sample

    # Row tile: multiple of 8 (f32 sublane); 512 rows keep per-step VMEM buffers
    # (input + 2 outputs + intermediates, double-buffered) at a few MB — far under
    # v7x's 64 MiB physical / 32 MiB default-scoped VMEM.
    TB = min(block_rows, _round_up(N, 8))
    Npad = _round_up(N, TB)
    if Npad != N:
        x = jnp.pad(x, ((0, Npad - N), (0, 0)))
    grid = (Npad // TB,)

    consts = (prep["m1"], prep["b1"], prep["m2"], prep["b2"], prep["m3"],
              prep["b3"], prep["w1"], prep["c1"], prep["w2"], prep["c2"],
              prep["w3"], prep["c3"])

    in_specs = [pl.BlockSpec((TB, 64), lambda i: (i, 0))] + [
        pl.BlockSpec(a.shape, lambda i: (0, 0)) for a in consts]
    out_specs = (pl.BlockSpec((TB, 128), lambda i: (i, 0)),
                 pl.BlockSpec((TB, 128), lambda i: (i, 0)))
    out_shape = (jax.ShapeDtypeStruct((Npad, 128), jnp.float32),   # logits (padded)
                 jax.ShapeDtypeStruct((Npad, 128), jnp.float32))   # e1 (padded)

    flops_per_row = 2 * (64 * 256 + 256 * 512 + 128 * 512
                         + 128 * 400 + 400 * 128 + 128 * 128)
    const_bytes = sum(int(np.prod(a.shape)) * a.dtype.itemsize for a in consts)
    cost = pl.CostEstimate(
        flops=int(Npad * flops_per_row),
        transcendentals=0,
        bytes_accessed=int(Npad * 64 * 4 + 2 * Npad * 128 * 4 + const_bytes))

    out_pad, e1_pad = pl.pallas_call(
        _game_net_kernel,
        out_shape=out_shape,
        grid=grid,
        in_specs=in_specs,
        out_specs=out_specs,
        compiler_params=pltpu.CompilerParams(
            dimension_semantics=("parallel",)),
        cost_estimate=cost,
    )(x, *consts)

    return out_pad[:N, :2], e1_pad[:N, :50]


# ---------------------- pure-JAX reference (for checking) --------------------

def game_net_reference(params, x_nchw):
    def conv(x, w, b, pad):
        y = jax.lax.conv_general_dilated(
            x, w, (1, 1), [(pad, pad), (pad, pad)],
            dimension_numbers=("NCHW", "OIHW", "NCHW"))
        return y + b.reshape(1, -1, 1, 1)

    def maxpool2(x):
        return jax.lax.reduce_window(x, -jnp.inf, jax.lax.max,
                                     (1, 1, 2, 2), (1, 1, 2, 2), "VALID")

    x = x_nchw.astype(jnp.float32)
    x = jax.nn.relu(conv(x, params["conv1_w"], params["conv1_b"], 2))
    x = jax.nn.relu(maxpool2(conv(x, params["conv2_w"], params["conv2_b"], 1)))
    x = jax.nn.relu(maxpool2(conv(x, params["conv3_w"], params["conv3_b"], 1)))
    x = x.reshape(-1, 64)
    x = jax.nn.relu(x @ params["fc1_w"].T + params["fc1_b"])
    e1 = jax.nn.relu(x @ params["fc2_w"].T + params["fc2_b"])
    out = e1 @ params["fc3_w"].T + params["fc3_b"]
    return out, e1


# ----------------------------------- main -------------------------------------

if __name__ == "__main__":
    key = jax.random.PRNGKey(0)
    pkey, xkey = jax.random.split(key)
    params = init_params(pkey)
    prep = prepare_params(params)        # one-time weight lowering (off hot path)

    # Input is NCHW like PyTorch; .view(-1, 64) in the module implies 1x8x8 maps.
    x = jax.random.normal(xkey, (2, 1, 8, 8), jnp.float32)

    fwd = jax.jit(game_net_forward)
    out, e1 = fwd(prep, x)
    jax.block_until_ready((out, e1))

    ref_out, ref_e1 = game_net_reference(params, x)
    assert out.shape == (2, 2) and e1.shape == (2, 50)
    assert bool(jnp.all(jnp.isfinite(out))) and bool(jnp.all(jnp.isfinite(e1)))
    # bf16 matmul operands -> loose but bug-catching tolerance vs the f32 reference.
    assert float(jnp.max(jnp.abs(out - ref_out))) < 2e-2
    assert float(jnp.max(jnp.abs(e1 - ref_e1))) < 2e-2
    print("KERNEL_OK")
</pallas_src>

<mosaic_0001>
module attributes {stable_mosaic.version = 11 : i64} {
  func.func @_game_net_kernel(%arg0: i32, %arg1: memref<8x64xf32, #tpu.memory_space<vmem>>, %arg2: memref<64x256xbf16, #tpu.memory_space<vmem>>, %arg3: memref<1x256xf32, #tpu.memory_space<vmem>>, %arg4: memref<256x512xbf16, #tpu.memory_space<vmem>>, %arg5: memref<1x128xf32, #tpu.memory_space<vmem>>, %arg6: memref<128x512xbf16, #tpu.memory_space<vmem>>, %arg7: memref<1x128xf32, #tpu.memory_space<vmem>>, %arg8: memref<128x400xbf16, #tpu.memory_space<vmem>>, %arg9: memref<1x400xf32, #tpu.memory_space<vmem>>, %arg10: memref<400x128xbf16, #tpu.memory_space<vmem>>, %arg11: memref<1x128xf32, #tpu.memory_space<vmem>>, %arg12: memref<128x128xbf16, #tpu.memory_space<vmem>>, %arg13: memref<1x128xf32, #tpu.memory_space<vmem>>, %arg14: memref<8x128xf32, #tpu.memory_space<vmem>>, %arg15: memref<8x128xf32, #tpu.memory_space<vmem>>) attributes {dimension_semantics = [#tpu.dimension_semantics<parallel>], iteration_bounds = array<i64: 1>, scalar_prefetch = 0 : i64, scratch_operands = 0 : i64, tpu.core_type = #tpu.core_type<tc>, window_params = [{transform_indices = @transform_0, window_bounds = array<i64: 8, 64>}, {pipeline_mode = #tpu.pipeline_mode<synchronous>, transform_indices = @transform_1, window_bounds = array<i64: 64, 256>}, {pipeline_mode = #tpu.pipeline_mode<synchronous>, transform_indices = @transform_2, window_bounds = array<i64: 1, 256>}, {pipeline_mode = #tpu.pipeline_mode<synchronous>, transform_indices = @transform_3, window_bounds = array<i64: 256, 512>}, {pipeline_mode = #tpu.pipeline_mode<synchronous>, transform_indices = @transform_4, window_bounds = array<i64: 1, 128>}, {pipeline_mode = #tpu.pipeline_mode<synchronous>, transform_indices = @transform_5, window_bounds = array<i64: 128, 512>}, {pipeline_mode = #tpu.pipeline_mode<synchronous>, transform_indices = @transform_6, window_bounds = array<i64: 1, 128>}, {pipeline_mode = #tpu.pipeline_mode<synchronous>, transform_indices = @transform_7, window_bounds = array<i64: 128, 400>}, {pipeline_mode = #tpu.pipeline_mode<synchronous>, transform_indices = @transform_8, window_bounds = array<i64: 1, 400>}, {pipeline_mode = #tpu.pipeline_mode<synchronous>, transform_indices = @transform_9, window_bounds = array<i64: 400, 128>}, {pipeline_mode = #tpu.pipeline_mode<synchronous>, transform_indices = @transform_10, window_bounds = array<i64: 1, 128>}, {pipeline_mode = #tpu.pipeline_mode<synchronous>, transform_indices = @transform_11, window_bounds = array<i64: 128, 128>}, {pipeline_mode = #tpu.pipeline_mode<synchronous>, transform_indices = @transform_12, window_bounds = array<i64: 1, 128>}, {transform_indices = @transform_13, window_bounds = array<i64: 8, 128>}, {transform_indices = @transform_14, window_bounds = array<i64: 8, 128>}]} {
    %c0 = arith.constant 0 : index
    %c0_0 = arith.constant 0 : index
    %0 = vector.load %arg1[%c0, %c0_0] : memref<8x64xf32, #tpu.memory_space<vmem>>, vector<8x64xf32>
    %1 = arith.truncf %0 : vector<8x64xf32> to vector<8x64xbf16>
    %c0_1 = arith.constant 0 : index
    %c0_2 = arith.constant 0 : index
    %2 = vector.load %arg2[%c0_1, %c0_2] : memref<64x256xbf16, #tpu.memory_space<vmem>>, vector<64x256xbf16>
    %cst = arith.constant dense<0.000000e+00> : vector<8x256xf32>
    %3 = tpu.matmul %1, %2, %cst {dimension_numbers = #tpu.dot_dimension_numbers<[1], [0], [0], [1], [0, 0, 1, 1], [], []>} : vector<8x64xbf16>, vector<64x256xbf16>, vector<8x256xf32> -> vector<8x256xf32>
    %c0_3 = arith.constant 0 : index
    %c0_4 = arith.constant 0 : index
    %4 = vector.load %arg3[%c0_3, %c0_4] : memref<1x256xf32, #tpu.memory_space<vmem>>, vector<1x256xf32>
    %5 = vector.broadcast %4 : vector<1x256xf32> to vector<8x256xf32>
    %6 = arith.addf %3, %5 : vector<8x256xf32>
    %cst_5 = arith.constant 0.000000e+00 : f32
    %7 = vector.broadcast %cst_5 : f32 to vector<8x256xf32>
    %8 = arith.maximumf %6, %7 : vector<8x256xf32>
    %9 = arith.truncf %8 : vector<8x256xf32> to vector<8x256xbf16>
    %c0_6 = arith.constant 0 : index
    %c0_7 = arith.constant 0 : index
    %10 = vector.load %arg4[%c0_6, %c0_7] : memref<256x512xbf16, #tpu.memory_space<vmem>>, vector<256x512xbf16>
    %cst_8 = arith.constant dense<0.000000e+00> : vector<8x512xf32>
    %11 = tpu.matmul %9, %10, %cst_8 {dimension_numbers = #tpu.dot_dimension_numbers<[1], [0], [0], [1], [0, 0, 1, 1], [], []>} : vector<8x256xbf16>, vector<256x512xbf16>, vector<8x512xf32> -> vector<8x512xf32>
    %12 = vector.extract_strided_slice %11 {offsets = [0, 0], sizes = [8, 128], strides = [1, 1]} : vector<8x512xf32> to vector<8x128xf32>
    %13 = vector.extract_strided_slice %11 {offsets = [0, 128], sizes = [8, 128], strides = [1, 1]} : vector<8x512xf32> to vector<8x128xf32>
    %14 = arith.maximumf %12, %13 : vector<8x128xf32>
    %15 = vector.extract_strided_slice %11 {offsets = [0, 256], sizes = [8, 128], strides = [1, 1]} : vector<8x512xf32> to vector<8x128xf32>
    %16 = vector.extract_strided_slice %11 {offsets = [0, 384], sizes = [8, 128], strides = [1, 1]} : vector<8x512xf32> to vector<8x128xf32>
    %17 = arith.maximumf %15, %16 : vector<8x128xf32>
    %18 = arith.maximumf %14, %17 : vector<8x128xf32>
    %c0_9 = arith.constant 0 : index
    %c0_10 = arith.constant 0 : index
    %19 = vector.load %arg5[%c0_9, %c0_10] : memref<1x128xf32, #tpu.memory_space<vmem>>, vector<1x128xf32>
    %20 = vector.broadcast %19 : vector<1x128xf32> to vector<8x128xf32>
    %21 = arith.addf %18, %20 : vector<8x128xf32>
    %cst_11 = arith.constant 0.000000e+00 : f32
    %22 = vector.broadcast %cst_11 : f32 to vector<8x128xf32>
    %23 = arith.maximumf %21, %22 : vector<8x128xf32>
    %24 = arith.truncf %23 : vector<8x128xf32> to vector<8x128xbf16>
    %c0_12 = arith.constant 0 : index
    %c0_13 = arith.constant 0 : index
    %25 = vector.load %arg6[%c0_12, %c0_13] : memref<128x512xbf16, #tpu.memory_space<vmem>>, vector<128x512xbf16>
    %cst_14 = arith.constant dense<0.000000e+00> : vector<8x512xf32>
    %26 = tpu.matmul %24, %25, %cst_14 {dimension_numbers = #tpu.dot_dimension_numbers<[1], [0], [0], [1], [0, 0, 1, 1], [], []>} : vector<8x128xbf16>, vector<128x512xbf16>, vector<8x512xf32> -> vector<8x512xf32>
    %27 = vector.extract_strided_slice %26 {offsets = [0, 0], sizes = [8, 128], strides = [1, 1]} : vector<8x512xf32> to vector<8x128xf32>
    %28 = vector.extract_strided_slice %26 {offsets = [0, 128], sizes = [8, 128], strides = [1, 1]} : vector<8x512xf32> to vector<8x128xf32>
    %29 = arith.maximumf %27, %28 : vector<8x128xf32>
    %30 = vector.extract_strided_slice %26 {offsets = [0, 256], sizes = [8, 128], strides = [1, 1]} : vector<8x512xf32> to vector<8x128xf32>
    %31 = vector.extract_strided_slice %26 {offsets = [0, 384], sizes = [8, 128], strides = [1, 1]} : vector<8x512xf32> to vector<8x128xf32>
    %32 = arith.maximumf %30, %31 : vector<8x128xf32>
    %33 = arith.maximumf %29, %32 : vector<8x128xf32>
    %c0_15 = arith.constant 0 : index
    %c0_16 = arith.constant 0 : index
    %34 = vector.load %arg7[%c0_15, %c0_16] : memref<1x128xf32, #tpu.memory_space<vmem>>, vector<1x128xf32>
    %35 = vector.broadcast %34 : vector<1x128xf32> to vector<8x128xf32>
    %36 = arith.addf %33, %35 : vector<8x128xf32>
    %cst_17 = arith.constant 0.000000e+00 : f32
    %37 = vector.broadcast %cst_17 : f32 to vector<8x128xf32>
    %38 = arith.maximumf %36, %37 : vector<8x128xf32>
    %39 = arith.truncf %38 : vector<8x128xf32> to vector<8x128xbf16>
    %c0_18 = arith.constant 0 : index
    %c0_19 = arith.constant 0 : index
    %40 = vector.load %arg8[%c0_18, %c0_19] : memref<128x400xbf16, #tpu.memory_space<vmem>>, vector<128x400xbf16>
    %cst_20 = arith.constant dense<0.000000e+00> : vector<8x400xf32>
    %41 = tpu.matmul %39, %40, %cst_20 {dimension_numbers = #tpu.dot_dimension_numbers<[1], [0], [0], [1], [0, 0, 1, 1], [], []>} : vector<8x128xbf16>, vector<128x400xbf16>, vector<8x400xf32> -> vector<8x400xf32>
    %c0_21 = arith.constant 0 : index
    %c0_22 = arith.constant 0 : index
    %42 = vector.load %arg9[%c0_21, %c0_22] : memref<1x400xf32, #tpu.memory_space<vmem>>, vector<1x400xf32>
    %43 = vector.broadcast %42 : vector<1x400xf32> to vector<8x400xf32>
    %44 = arith.addf %41, %43 : vector<8x400xf32>
    %cst_23 = arith.constant 0.000000e+00 : f32
    %45 = vector.broadcast %cst_23 : f32 to vector<8x400xf32>
    %46 = arith.maximumf %44, %45 : vector<8x400xf32>
    %47 = arith.truncf %46 : vector<8x400xf32> to vector<8x400xbf16>
    %c0_24 = arith.constant 0 : index
    %c0_25 = arith.constant 0 : index
    %48 = vector.load %arg10[%c0_24, %c0_25] : memref<400x128xbf16, #tpu.memory_space<vmem>>, vector<400x128xbf16>
    %cst_26 = arith.constant dense<0.000000e+00> : vector<8x128xf32>
    %49 = tpu.matmul %47, %48, %cst_26 {dimension_numbers = #tpu.dot_dimension_numbers<[1], [0], [0], [1], [0, 0, 1, 1], [], []>} : vector<8x400xbf16>, vector<400x128xbf16>, vector<8x128xf32> -> vector<8x128xf32>
    %c0_27 = arith.constant 0 : index
    %c0_28 = arith.constant 0 : index
    %50 = vector.load %arg11[%c0_27, %c0_28] : memref<1x128xf32, #tpu.memory_space<vmem>>, vector<1x128xf32>
    %51 = vector.broadcast %50 : vector<1x128xf32> to vector<8x128xf32>
    %52 = arith.addf %49, %51 : vector<8x128xf32>
    %cst_29 = arith.constant 0.000000e+00 : f32
    %53 = vector.broadcast %cst_29 : f32 to vector<8x128xf32>
    %54 = arith.maximumf %52, %53 : vector<8x128xf32>
    %c0_30 = arith.constant 0 : index
    %c0_31 = arith.constant 0 : index
    %55 = vector.load %arg15[%c0_30, %c0_31] : memref<8x128xf32, #tpu.memory_space<vmem>>, vector<8x128xf32>
    tpu.vector_store %arg15[%c0_30, %c0_31], %54 {strides = array<i32>} : memref<8x128xf32, #tpu.memory_space<vmem>>, vector<8x128xf32>,
    %56 = arith.truncf %54 : vector<8x128xf32> to vector<8x128xbf16>
    %c0_32 = arith.constant 0 : index
    %c0_33 = arith.constant 0 : index
    %57 = vector.load %arg12[%c0_32, %c0_33] : memref<128x128xbf16, #tpu.memory_space<vmem>>, vector<128x128xbf16>
    %cst_34 = arith.constant dense<0.000000e+00> : vector<8x128xf32>
    %58 = tpu.matmul %56, %57, %cst_34 {dimension_numbers = #tpu.dot_dimension_numbers<[1], [0], [0], [1], [0, 0, 1, 1], [], []>} : vector<8x128xbf16>, vector<128x128xbf16>, vector<8x128xf32> -> vector<8x128xf32>
    %c0_35 = arith.constant 0 : index
    %c0_36 = arith.constant 0 : index
    %59 = vector.load %arg13[%c0_35, %c0_36] : memref<1x128xf32, #tpu.memory_space<vmem>>, vector<1x128xf32>
    %60 = vector.broadcast %59 : vector<1x128xf32> to vector<8x128xf32>
    %61 = arith.addf %58, %60 : vector<8x128xf32>
    %c0_37 = arith.constant 0 : index
    %c0_38 = arith.constant 0 : index
    %62 = vector.load %arg14[%c0_37, %c0_38] : memref<8x128xf32, #tpu.memory_space<vmem>>, vector<8x128xf32>
    tpu.vector_store %arg14[%c0_37, %c0_38], %61 {strides = array<i32>} : memref<8x128xf32, #tpu.memory_space<vmem>>, vector<8x128xf32>,
    return
  }
  func.func @transform_0(%arg0: i32) -> (i32, i32) {
    %c0_i32 = arith.constant 0 : i32
    %c0_i32_0 = arith.constant 0 : i32
    return %arg0, %c0_i32 : i32, i32
  }
  func.func @transform_1(%arg0: i32) -> (i32, i32) {
    %c0_i32 = arith.constant 0 : i32
    %c0_i32_0 = arith.constant 0 : i32
    %c0_i32_1 = arith.constant 0 : i32
    return %c0_i32, %c0_i32_0 : i32, i32
  }
  func.func @transform_2(%arg0: i32) -> (i32, i32) {
    %c0_i32 = arith.constant 0 : i32
    %c0_i32_0 = arith.constant 0 : i32
    %c0_i32_1 = arith.constant 0 : i32
    return %c0_i32, %c0_i32_0 : i32, i32
  }
  func.func @transform_3(%arg0: i32) -> (i32, i32) {
    %c0_i32 = arith.constant 0 : i32
    %c0_i32_0 = arith.constant 0 : i32
    %c0_i32_1 = arith.constant 0 : i32
    return %c0_i32, %c0_i32_0 : i32, i32
  }
  func.func @transform_4(%arg0: i32) -> (i32, i32) {
    %c0_i32 = arith.constant 0 : i32
    %c0_i32_0 = arith.constant 0 : i32
    %c0_i32_1 = arith.constant 0 : i32
    return %c0_i32, %c0_i32_0 : i32, i32
  }
  func.func @transform_5(%arg0: i32) -> (i32, i32) {
    %c0_i32 = arith.constant 0 : i32
    %c0_i32_0 = arith.constant 0 : i32
    %c0_i32_1 = arith.constant 0 : i32
    return %c0_i32, %c0_i32_0 : i32, i32
  }
  func.func @transform_6(%arg0: i32) -> (i32, i32) {
    %c0_i32 = arith.constant 0 : i32
    %c0_i32_0 = arith.constant 0 : i32
    %c0_i32_1 = arith.constant 0 : i32
    return %c0_i32, %c0_i32_0 : i32, i32
  }
  func.func @transform_7(%arg0: i32) -> (i32, i32) {
    %c0_i32 = arith.constant 0 : i32
    %c0_i32_0 = arith.constant 0 : i32
    %c0_i32_1 = arith.constant 0 : i32
    return %c0_i32, %c0_i32_0 : i32, i32
  }
  func.func @transform_8(%arg0: i32) -> (i32, i32) {
    %c0_i32 = arith.constant 0 : i32
    %c0_i32_0 = arith.constant 0 : i32
    %c0_i32_1 = arith.constant 0 : i32
    return %c0_i32, %c0_i32_0 : i32, i32
  }
  func.func @transform_9(%arg0: i32) -> (i32, i32) {
    %c0_i32 = arith.constant 0 : i32
    %c0_i32_0 = arith.constant 0 : i32
    %c0_i32_1 = arith.constant 0 : i32
    return %c0_i32, %c0_i32_0 : i32, i32
  }
  func.func @transform_10(%arg0: i32) -> (i32, i32) {
    %c0_i32 = arith.constant 0 : i32
    %c0_i32_0 = arith.constant 0 : i32
    %c0_i32_1 = arith.constant 0 : i32
    return %c0_i32, %c0_i32_0 : i32, i32
  }
  func.func @transform_11(%arg0: i32) -> (i32, i32) {
    %c0_i32 = arith.constant 0 : i32
    %c0_i32_0 = arith.constant 0 : i32
    %c0_i32_1 = arith.constant 0 : i32
    return %c0_i32, %c0_i32_0 : i32, i32
  }
  func.func @transform_12(%arg0: i32) -> (i32, i32) {
    %c0_i32 = arith.constant 0 : i32
    %c0_i32_0 = arith.constant 0 : i32
    %c0_i32_1 = arith.constant 0 : i32
    return %c0_i32, %c0_i32_0 : i32, i32
  }
  func.func @transform_13(%arg0: i32) -> (i32, i32) {
    %c0_i32 = arith.constant 0 : i32
    %c0_i32_0 = arith.constant 0 : i32
    return %arg0, %c0_i32 : i32, i32
  }
  func.func @transform_14(%arg0: i32) -> (i32, i32) {
    %c0_i32 = arith.constant 0 : i32
    %c0_i32_0 = arith.constant 0 : i32
    return %arg0, %c0_i32 : i32, i32
  }
}

</mosaic_0001>

<llo_original>
// kernel: game_net_forward.1
$region0: #{game_net_forward.1}
  #allocation0 [shape = 'u32[]', space=smem, size = 0x4, offset = 0x4, fixed_abs, tag = 'smem constant byte address 0x4 - core index']
  #allocation1 [shape = 'u32[72,128]{1,0:T(1,128)}', space=vmem, size = 0x9000, scoped, tag = 'internal scratch']
  %s0 = inlined_call_operand.vmem [shape: f32[8,64], index: 0, kind: input, shape index: {}]
  %s1 = inlined_call_operand.hbm [shape: bf16[64,256], index: 1, kind: input, shape index: {}]
  %s2 = inlined_call_operand.vmem [shape: f32[1,256], index: 2, kind: input, shape index: {}]
  %s3 = inlined_call_operand.hbm [shape: bf16[256,512], index: 3, kind: input, shape index: {}]
  %s4 = inlined_call_operand.vmem [shape: f32[1,128], index: 4, kind: input, shape index: {}]
  %s5 = inlined_call_operand.vmem [shape: bf16[128,512], index: 5, kind: input, shape index: {}]
  %s6 = inlined_call_operand.vmem [shape: f32[1,128], index: 6, kind: input, shape index: {}]
  %s7 = inlined_call_operand.vmem [shape: bf16[128,400], index: 7, kind: input, shape index: {}]
  %s8 = inlined_call_operand.vmem [shape: f32[1,400], index: 8, kind: input, shape index: {}]
  %s9 = inlined_call_operand.vmem [shape: bf16[400,128], index: 9, kind: input, shape index: {}]
  %s10 = inlined_call_operand.vmem [shape: f32[1,128], index: 10, kind: input, shape index: {}]
  %s11 = inlined_call_operand.hbm [shape: bf16[128,128], index: 11, kind: input, shape index: {}]
  %s12 = inlined_call_operand.vmem [shape: f32[1,128], index: 12, kind: input, shape index: {}]
  %s13 = inlined_call_operand.vmem [shape: f32[8,128], index: 13, kind: output, shape index: {0}]
  %s14 = inlined_call_operand.vmem [shape: f32[8,128], index: 14, kind: output, shape index: {1}]
  %15 = xla_tuple %s13, %s14
  %s16 = sld [smem:[#allocation0]]
  $region82: #{game_net_forward.1} parent=0
    _
  %s18 = ssub.s32 1, %s16
  %s19 = scalar_select 0, %s18, %s16
  $region1: #{game_net_forward.1} parent=0
    #allocation2 [shape = 'u8[32768]{0}', space=vmem, size = 0x8000, scoped, tag = 'input window, operand 1, single buffered']
    #allocation3 [shape = 's32[1]{0}', space=sflag, size = 0x4, scoped, tag = 'scoped memory for game_net_forward.1']
    #allocation4 [shape = 'u8[262144]{0}', space=vmem, size = 0x40000, scoped, tag = 'input window, operand 3, single buffered']
    #allocation5 [shape = 's32[1]{0}', space=sflag, size = 0x4, scoped, tag = 'scoped memory for game_net_forward.1']
    #allocation6 [shape = 'u8[32768]{0}', space=vmem, size = 0x8000, scoped, tag = 'input window, operand 11, single buffered']
    %20 = vsyncpa [#allocation3], 0
    %21 = vsyncpa [#allocation5], 0
    // Predicated region
    $region2: #{game_net_forward.1} parent=1 // pred_check
      _
    $region3: #{game_net_forward.1} parent=1 // pred_check_branch
      %23 = sbr.rel (0) target = $region5
    $region4: #{game_net_forward.1} parent=1 // pred_region
      _
    $region5: #{game_net_forward.1} parent=1 // pred_fallthru
      _
    // Predicated region
    $region6: #{game_net_forward.1} parent=1 // pred_check
      _
    $region7: #{game_net_forward.1} parent=1 // pred_check_branch
      %25 = sbr.rel (0) target = $region9
    $region8: #{game_net_forward.1} parent=1 // pred_region
      %27 = vsyncadd [#allocation3], 0
      %s28 = sshll.u32 %s1, 4
      %s29 = int_to_ptr.hbm [resolvable:$true] %s28
      %s30 = sshll.u32 [#allocation2], 4
      %s31 = int_to_ptr.vmem [resolvable:$true] %s30
      %36 = dma.hbm_to_vmem [thread:$0]  %s29, 1024, %s31, [#allocation3], 128, 128, 8
    $region9: #{game_net_forward.1} parent=1 // pred_fallthru
      _
    // Predicated region
    $region10: #{game_net_forward.1} parent=1 // pred_check
      _
    $region11: #{game_net_forward.1} parent=1 // pred_check_branch
      %38 = sbr.rel (0) target = $region13
    $region12: #{game_net_forward.1} parent=1 // pred_region
      _
    $region13: #{game_net_forward.1} parent=1 // pred_fallthru
      _
    // Predicated region
    $region14: #{game_net_forward.1} parent=1 // pred_check
      _
    $region15: #{game_net_forward.1} parent=1 // pred_check_branch
      %40 = sbr.rel (0) target = $region17
    $region16: #{game_net_forward.1} parent=1 // pred_region
      %42 = vsyncadd [#allocation5], 0
      %s43 = sshll.u32 %s3, 4
      %s44 = int_to_ptr.hbm [resolvable:$true] %s43
      %s45 = sshll.u32 [#allocation4], 4
      %s46 = int_to_ptr.vmem [resolvable:$true] %s45
      %51 = dma.hbm_to_vmem [thread:$0]  %s44, 8192, %s46, [#allocation5], 256, 256, 16
    $region17: #{game_net_forward.1} parent=1 // pred_fallthru
      _
    // Predicated region
    $region18: #{game_net_forward.1} parent=1 // pred_check
      _
    $region19: #{game_net_forward.1} parent=1 // pred_check_branch
      %53 = sbr.rel (0) target = $region21
    $region20: #{game_net_forward.1} parent=1 // pred_region
      _
    $region21: #{game_net_forward.1} parent=1 // pred_fallthru
      _
    // Predicated region
    $region22: #{game_net_forward.1} parent=1 // pred_check
      _
    $region23: #{game_net_forward.1} parent=1 // pred_check_branch
      %55 = sbr.rel (0) target = $region25
    $region24: #{game_net_forward.1} parent=1 // pred_region
      _
    $region25: #{game_net_forward.1} parent=1 // pred_fallthru
      _
    // Predicated region
    $region26: #{game_net_forward.1} parent=1 // pred_check
      _
    $region27: #{game_net_forward.1} parent=1 // pred_check_branch
      %57 = sbr.rel (0) target = $region29
    $region28: #{game_net_forward.1} parent=1 // pred_region
      _
    $region29: #{game_net_forward.1} parent=1 // pred_fallthru
      _
    // Predicated region
    $region30: #{game_net_forward.1} parent=1 // pred_check
      _
    $region31: #{game_net_forward.1} parent=1 // pred_check_branch
      %59 = sbr.rel (0) target = $region33
    $region32: #{game_net_forward.1} parent=1 // pred_region
      _
    $region33: #{game_net_forward.1} parent=1 // pred_fallthru
      _
    // Predicated region
    $region34: #{game_net_forward.1} parent=1 // pred_check
      _
    $region35: #{game_net_forward.1} parent=1 // pred_check_branch
      %61 = sbr.rel (0) target = $region37
    $region36: #{game_net_forward.1} parent=1 // pred_region
      _
    $region37: #{game_net_forward.1} parent=1 // pred_fallthru
      _
    // Predicated region
    $region38: #{game_net_forward.1} parent=1 // pred_check
      _
    $region39: #{game_net_forward.1} parent=1 // pred_check_branch
      %63 = sbr.rel (0) target = $region41
    $region40: #{game_net_forward.1} parent=1 // pred_region
      _
    $region41: #{game_net_forward.1} parent=1 // pred_fallthru
      _
    // Predicated region
    $region42: #{game_net_forward.1} parent=1 // pred_check
      _
    $region43: #{game_net_forward.1} parent=1 // pred_check_branch
      %65 = sbr.rel (0) target = $region45
    $region44: #{game_net_forward.1} parent=1 // pred_region
      _
    $region45: #{game_net_forward.1} parent=1 // pred_fallthru
      _
    // Predicated region
    $region46: #{game_net_forward.1} parent=1 // pred_check
      _
    $region47: #{game_net_forward.1} parent=1 // pred_check_branch
      %67 = sbr.rel (0) target = $region49
    $region48: #{game_net_forward.1} parent=1 // pred_region
      %69 = vsyncadd [#allocation5], 0
      %s70 = sshll.u32 %s11, 4
      %s71 = int_to_ptr.hbm [resolvable:$true] %s70
      %s72 = sshll.u32 [#allocation6], 4
      %s73 = int_to_ptr.vmem [resolvable:$true] %s72
      %78 = dma.hbm_to_vmem [thread:$0]  %s71, 1024, %s73, [#allocation5], 64, 64, 4
    $region49: #{game_net_forward.1} parent=1 // pred_fallthru
      _
    // Predicated region
    $region50: #{game_net_forward.1} parent=1 // pred_check
      _
    $region51: #{game_net_forward.1} parent=1 // pred_check_branch
      %80 = sbr.rel (0) target = $region53
    $region52: #{game_net_forward.1} parent=1 // pred_region
      _
    $region53: #{game_net_forward.1} parent=1 // pred_fallthru
      _
    // Predicated region
    $region54: #{game_net_forward.1} parent=1 // pred_check
      _
    $region55: #{game_net_forward.1} parent=1 // pred_check_branch
      %82 = sbr.rel (0) target = $region57
    $region56: #{game_net_forward.1} parent=1 // pred_region
      %84 = dma.done [#allocation3], 1024
    $region57: #{game_net_forward.1} parent=1 // pred_fallthru
      _
    // Predicated region
    $region58: #{game_net_forward.1} parent=1 // pred_check
      _
    $region59: #{game_net_forward.1} parent=1 // pred_check_branch
      %86 = sbr.rel (0) target = $region61
    $region60: #{game_net_forward.1} parent=1 // pred_region
      %88 = dma.done [#allocation5], 8192
    $region61: #{game_net_forward.1} parent=1 // pred_fallthru
      _
    // Predicated region
    $region62: #{game_net_forward.1} parent=1 // pred_check
      _
    $region63: #{game_net_forward.1} parent=1 // pred_check_branch
      %90 = sbr.rel (0) target = $region65
    $region64: #{game_net_forward.1} parent=1 // pred_region
      %92 = dma.done [#allocation5], 1024
    $region65: #{game_net_forward.1} parent=1 // pred_fallthru
      _
    %v94 = vld [vmem:[%s0] sm:$0xff]
    %v95 = vpack.c.bf16 %v94, %v94
    %v96 = vld [vmem:[#allocation2] sm:$0xff]
    %v97 = vld [vmem:[#allocation2 + $0x8] sm:$0xff]
    %v98 = vld [vmem:[#allocation2 + $0x10] sm:$0xff]
    %v99 = vld [vmem:[#allocation2 + $0x18] sm:$0xff]
    %v100 = vld [vmem:[#allocation2 + $0x20] sm:$0xff]
    %v101 = vld [vmem:[#allocation2 + $0x28] sm:$0xff]
    %v102 = vld [vmem:[#allocation2 + $0x30] sm:$0xff]
    %v103 = vld [vmem:[#allocation2 + $0x38] sm:$0xff]
    %v104 = vld [vmem:[%s2] sm:$0x3]
    %v106 = vperm.slane %v104, 0
    %v107 = vperm.slane %v104, 1
    %v118 = vunpack.c.l.b16 %v96
    %v119 = vunpack.c.h.b16 %v96
    %v120 = vunpack.c.l.b16 %v97
    %v121 = vunpack.c.h.b16 %v97
    %v122 = vunpack.c.l.b16 %v98
    %v123 = vunpack.c.h.b16 %v98
    %v124 = vunpack.c.l.b16 %v99
    %v125 = vunpack.c.h.b16 %v99
    %v126 = vunpack.c.l.b16 %v100
    %v127 = vunpack.c.h.b16 %v100
    %v128 = vunpack.c.l.b16 %v101
    %v129 = vunpack.c.h.b16 %v101
    %v130 = vunpack.c.l.b16 %v102
    %v131 = vunpack.c.h.b16 %v102
    %v132 = vunpack.c.l.b16 %v103
    %v133 = vunpack.c.h.b16 %v103
    %v134 = vpack.c.b16 %v120, %v118
    %v135 = vpack.c.b16 %v121, %v119
    %v136 = vpack.c.b16 %v124, %v122
    %v137 = vpack.c.b16 %v125, %v123
    %v138 = vpack.c.b16 %v128, %v126
    %v139 = vpack.c.b16 %v129, %v127
    %v140 = vpack.c.b16 %v132, %v130
    %v141 = vpack.c.b16 %v133, %v131
    %vm150 = vcmask 523264
    %v152 = vsel %vm150, %v95, 0
    %154 = vmatpush.bf16.msra.mxu0 0
    %155 = vmatpush.bf16.msra.mxu0 0
    %156 = vmatpush.bf16.msra.mxu0 0
    %157 = vmatpush.bf16.msra.mxu0 0
    %158 = vmatpush.bf16.msra.mxu0 %v140
    %159 = vmatpush.bf16.msra.mxu0 %v138
    %160 = vmatpush.bf16.msra.mxu0 %v136
    %161 = vmatpush.bf16.msra.mxu0 %v134
    %162 = vmatmul.bf16.gmra.mxu0 %v152
    %v163 = vpop.f32.mrf.mxu0
    %v164 = vadd.f32 %v106, %v163
    %v165 = vpop.f32.mrf.mxu0
    %166 = vdwg.mxu0
    %167 = vmatpush.bf16.msra.mxu0 0
    %168 = vmatpush.bf16.msra.mxu0 0
    %169 = vmatpush.bf16.msra.mxu0 0
    %170 = vmatpush.bf16.msra.mxu0 0
    %171 = vmatpush.bf16.msra.mxu0 %v141
    %172 = vmatpush.bf16.msra.mxu0 %v139
    %173 = vmatpush.bf16.msra.mxu0 %v137
    %174 = vmatpush.bf16.msra.mxu0 %v135
    %175 = vmatmul.bf16.gmra.mxu0 %v152
    %v176 = vpop.f32.mrf.mxu0
    %v177 = vadd.f32 %v107, %v176
    %v178 = vpop.f32.mrf.mxu0
    %179 = vdwg.mxu0
    %v180 = vmax.f32 %v164, 0.0
    %v181 = vmax.f32 %v177, 0.0
    %v182 = vpack.c.bf16 %v180, %v180
    %v183 = vpack.c.bf16 %v181, %v181
    %v184 = vld [vmem:[#allocation4] sm:$0xff]
    %v185 = vld [vmem:[#allocation4 + $0x8] sm:$0xff]
    %v186 = vld [vmem:[#allocation4 + $0x10] sm:$0xff]
    %v187 = vld [vmem:[#allocation4 + $0x18] sm:$0xff]
    %v188 = vld [vmem:[#allocation4 + $0x20] sm:$0xff]
    %v189 = vld [vmem:[#allocation4 + $0x28] sm:$0xff]
    %v190 = vld [vmem:[#allocation4 + $0x30] sm:$0xff]
    %v191 = vld [vmem:[#allocation4 + $0x38] sm:$0xff]
    %v192 = vld [vmem:[#allocation4 + $0x40] sm:$0xff]
    %v193 = vld [vmem:[#allocation4 + $0x48] sm:$0xff]
    %v194 = vld [vmem:[#allocation4 + $0x50] sm:$0xff]
    %v195 = vld [vmem:[#allocation4 + $0x58] sm:$0xff]
    %v196 = vld [vmem:[#allocation4 + $0x60] sm:$0xff]
    %v197 = vld [vmem:[#allocation4 + $0x68] sm:$0xff]
    %v198 = vld [vmem:[#allocation4 + $0x70] sm:$0xff]
    %v199 = vld [vmem:[#allocation4 + $0x78] sm:$0xff]
    %v200 = vld [vmem:[#allocation4 + $0x80] sm:$0xff]
    %v201 = vld [vmem:[#allocation4 + $0x88] sm:$0xff]
    %v202 = vld [vmem:[#allocation4 + $0x90] sm:$0xff]
    %v203 = vld [vmem:[#allocation4 + $0x98] sm:$0xff]
    %v204 = vld [vmem:[#allocation4 + $0xa0] sm:$0xff]
    %v205 = vld [vmem:[#allocation4 + $0xa8] sm:$0xff]
    %v206 = vld [vmem:[#allocation4 + $0xb0] sm:$0xff]
    %v207 = vld [vmem:[#allocation4 + $0xb8] sm:$0xff]
    %v208 = vld [vmem:[#allocation4 + $0xc0] sm:$0xff]
    %v209 = vld [vmem:[#allocation4 + $0xc8] sm:$0xff]
    %v210 = vld [vmem:[#allocation4 + $0xd0] sm:$0xff]
    %v211 = vld [vmem:[#allocation4 + $0xd8] sm:$0xff]
    %v212 = vld [vmem:[#allocation4 + $0xe0] sm:$0xff]
    %v213 = vld [vmem:[#allocation4 + $0xe8] sm:$0xff]
    %v214 = vld [vmem:[#allocation4 + $0xf0] sm:$0xff]
    %v215 = vld [vmem:[#allocation4 + $0xf8] sm:$0xff]
    %v216 = vld [vmem:[#allocation4 + $0x100] sm:$0xff]
    %v217 = vld [vmem:[#allocation4 + $0x108] sm:$0xff]
    %v218 = vld [vmem:[#allocation4 + $0x110] sm:$0xff]
    %v219 = vld [vmem:[#allocation4 + $0x118] sm:$0xff]
    %v220 = vld [vmem:[#allocation4 + $0x120] sm:$0xff]
    %v221 = vld [vmem:[#allocation4 + $0x128] sm:$0xff]
    %v222 = vld [vmem:[#allocation4 + $0x130] sm:$0xff]
    %v223 = vld [vmem:[#allocation4 + $0x138] sm:$0xff]
    %v224 = vld [vmem:[#allocation4 + $0x140] sm:$0xff]
    %v225 = vld [vmem:[#allocation4 + $0x148] sm:$0xff]
    %v226 = vld [vmem:[#allocation4 + $0x150] sm:$0xff]
    %v227 = vld [vmem:[#allocation4 + $0x158] sm:$0xff]
    %v228 = vld [vmem:[#allocation4 + $0x160] sm:$0xff]
    %v229 = vld [vmem:[#allocation4 + $0x168] sm:$0xff]
    %v230 = vld [vmem:[#allocation4 + $0x170] sm:$0xff]
    %v231 = vld [vmem:[#allocation4 + $0x178] sm:$0xff]
    %v232 = vld [vmem:[#allocation4 + $0x180] sm:$0xff]
    %v233 = vld [vmem:[#allocation4 + $0x188] sm:$0xff]
    %v234 = vld [vmem:[#allocation4 + $0x190] sm:$0xff]
    %v235 = vld [vmem:[#allocation4 + $0x198] sm:$0xff]
    %v236 = vld [vmem:[#allocation4 + $0x1a0] sm:$0xff]
    %v237 = vld [vmem:[#allocation4 + $0x1a8] sm:$0xff]
    %v238 = vld [vmem:[#allocation4 + $0x1b0] sm:$0xff]
    %v239 = vld [vmem:[#allocation4 + $0x1b8] sm:$0xff]
    %v240 = vld [vmem:[#allocation4 + $0x1c0] sm:$0xff]
    %v241 = vld [vmem:[#allocation4 + $0x1c8] sm:$0xff]
    %v242 = vld [vmem:[#allocation4 + $0x1d0] sm:$0xff]
    %v243 = vld [vmem:[#allocation4 + $0x1d8] sm:$0xff]
    %v244 = vld [vmem:[#allocation4 + $0x1e0] sm:$0xff]
    %v245 = vld [vmem:[#allocation4 + $0x1e8] sm:$0xff]
    %v246 = vld [vmem:[#allocation4 + $0x1f0] sm:$0xff]
    %v247 = vld [vmem:[#allocation4 + $0x1f8] sm:$0xff]
    %v312 = vunpack.c.l.b16 %v184
    %v313 = vunpack.c.h.b16 %v184
    %v314 = vunpack.c.l.b16 %v185
    %v315 = vunpack.c.h.b16 %v185
    %v316 = vunpack.c.l.b16 %v186
    %v317 = vunpack.c.h.b16 %v186
    %v318 = vunpack.c.l.b16 %v187
    %v319 = vunpack.c.h.b16 %v187
    %v320 = vunpack.c.l.b16 %v188
    %v321 = vunpack.c.h.b16 %v188
    %v322 = vunpack.c.l.b16 %v189
    %v323 = vunpack.c.h.b16 %v189
    %v324 = vunpack.c.l.b16 %v190
    %v325 = vunpack.c.h.b16 %v190
    %v326 = vunpack.c.l.b16 %v191
    %v327 = vunpack.c.h.b16 %v191
    %v328 = vunpack.c.l.b16 %v192
    %v329 = vunpack.c.h.b16 %v192
    %v330 = vunpack.c.l.b16 %v193
    %v331 = vunpack.c.h.b16 %v193
    %v332 = vunpack.c.l.b16 %v194
    %v333 = vunpack.c.h.b16 %v194
    %v334 = vunpack.c.l.b16 %v195
    %v335 = vunpack.c.h.b16 %v195
    %v336 = vunpack.c.l.b16 %v196
    %v337 = vunpack.c.h.b16 %v196
    %v338 = vunpack.c.l.b16 %v197
    %v339 = vunpack.c.h.b16 %v197
    %v340 = vunpack.c.l.b16 %v198
    %v341 = vunpack.c.h.b16 %v198
    %v342 = vunpack.c.l.b16 %v199
    %v343 = vunpack.c.h.b16 %v199
    %v344 = vunpack.c.l.b16 %v200
    %v345 = vunpack.c.h.b16 %v200
    %v346 = vunpack.c.l.b16 %v201
    %v347 = vunpack.c.h.b16 %v201
    %v348 = vunpack.c.l.b16 %v202
    %v349 = vunpack.c.h.b16 %v202
    %v350 = vunpack.c.l.b16 %v203
    %v351 = vunpack.c.h.b16 %v203
    %v352 = vunpack.c.l.b16 %v204
    %v353 = vunpack.c.h.b16 %v204
    %v354 = vunpack.c.l.b16 %v205
    %v355 = vunpack.c.h.b16 %v205
    %v356 = vunpack.c.l.b16 %v206
    %v357 = vunpack.c.h.b16 %v206
    %v358 = vunpack.c.l.b16 %v207
    %v359 = vunpack.c.h.b16 %v207
    %v360 = vunpack.c.l.b16 %v208
    %v361 = vunpack.c.h.b16 %v208
    %v362 = vunpack.c.l.b16 %v209
    %v363 = vunpack.c.h.b16 %v209
    %v364 = vunpack.c.l.b16 %v210
    %v365 = vunpack.c.h.b16 %v210
    %v366 = vunpack.c.l.b16 %v211
    %v367 = vunpack.c.h.b16 %v211
    %v368 = vunpack.c.l.b16 %v212
    %v369 = vunpack.c.h.b16 %v212
    %v370 = vunpack.c.l.b16 %v213
    %v371 = vunpack.c.h.b16 %v213
    %v372 = vunpack.c.l.b16 %v214
    %v373 = vunpack.c.h.b16 %v214
    %v374 = vunpack.c.l.b16 %v215
    %v375 = vunpack.c.h.b16 %v215
    %v376 = vunpack.c.l.b16 %v216
    %v377 = vunpack.c.h.b16 %v216
    %v378 = vunpack.c.l.b16 %v217
    %v379 = vunpack.c.h.b16 %v217
    %v380 = vunpack.c.l.b16 %v218
    %v381 = vunpack.c.h.b16 %v218
    %v382 = vunpack.c.l.b16 %v219
    %v383 = vunpack.c.h.b16 %v219
    %v384 = vunpack.c.l.b16 %v220
    %v385 = vunpack.c.h.b16 %v220
    %v386 = vunpack.c.l.b16 %v221
    %v387 = vunpack.c.h.b16 %v221
    %v388 = vunpack.c.l.b16 %v222
    %v389 = vunpack.c.h.b16 %v222
    %v390 = vunpack.c.l.b16 %v223
    %v391 = vunpack.c.h.b16 %v223
    %v392 = vunpack.c.l.b16 %v224
    %v393 = vunpack.c.h.b16 %v224
    %v394 = vunpack.c.l.b16 %v225
    %v395 = vunpack.c.h.b16 %v225
    %v396 = vunpack.c.l.b16 %v226
    %v397 = vunpack.c.h.b16 %v226
    %v398 = vunpack.c.l.b16 %v227
    %v399 = vunpack.c.h.b16 %v227
    %v400 = vunpack.c.l.b16 %v228
    %v401 = vunpack.c.h.b16 %v228
    %v402 = vunpack.c.l.b16 %v229
    %v403 = vunpack.c.h.b16 %v229
    %v404 = vunpack.c.l.b16 %v230
    %v405 = vunpack.c.h.b16 %v230
    %v406 = vunpack.c.l.b16 %v231
    %v407 = vunpack.c.h.b16 %v231
    %v408 = vunpack.c.l.b16 %v232
    %v409 = vunpack.c.h.b16 %v232
    %v410 = vunpack.c.l.b16 %v233
    %v411 = vunpack.c.h.b16 %v233
    %v412 = vunpack.c.l.b16 %v234
    %v413 = vunpack.c.h.b16 %v234
    %v414 = vunpack.c.l.b16 %v235
    %v415 = vunpack.c.h.b16 %v235
    %v416 = vunpack.c.l.b16 %v236
    %v417 = vunpack.c.h.b16 %v236
    %v418 = vunpack.c.l.b16 %v237
    %v419 = vunpack.c.h.b16 %v237
    %v420 = vunpack.c.l.b16 %v238
    %v421 = vunpack.c.h.b16 %v238
    %v422 = vunpack.c.l.b16 %v239
    %v423 = vunpack.c.h.b16 %v239
    %v424 = vunpack.c.l.b16 %v240
    %v425 = vunpack.c.h.b16 %v240
    %v426 = vunpack.c.l.b16 %v241
    %v427 = vunpack.c.h.b16 %v241
    %v428 = vunpack.c.l.b16 %v242
    %v429 = vunpack.c.h.b16 %v242
    %v430 = vunpack.c.l.b16 %v243
    %v431 = vunpack.c.h.b16 %v243
    %v432 = vunpack.c.l.b16 %v244
    %v433 = vunpack.c.h.b16 %v244
    %v434 = vunpack.c.l.b16 %v245
    %v435 = vunpack.c.h.b16 %v245
    %v436 = vunpack.c.l.b16 %v246
    %v437 = vunpack.c.h.b16 %v246
    %v438 = vunpack.c.l.b16 %v247
    %v439 = vunpack.c.h.b16 %v247
    %v440 = vpack.c.b16 %v316, %v312
    %v441 = vpack.c.b16 %v317, %v313
    %v442 = vpack.c.b16 %v318, %v314
    %v443 = vpack.c.b16 %v319, %v315
    %v444 = vpack.c.b16 %v324, %v320
    %v445 = vpack.c.b16 %v325, %v321
    %v446 = vpack.c.b16 %v326, %v322
    %v447 = vpack.c.b16 %v327, %v323
    %v448 = vpack.c.b16 %v332, %v328
    %v449 = vpack.c.b16 %v333, %v329
    %v450 = vpack.c.b16 %v334, %v330
    %v451 = vpack.c.b16 %v335, %v331
    %v452 = vpack.c.b16 %v340, %v336
    %v453 = vpack.c.b16 %v341, %v337
    %v454 = vpack.c.b16 %v342, %v338
    %v455 = vpack.c.b16 %v343, %v339
    %v456 = vpack.c.b16 %v348, %v344
    %v457 = vpack.c.b16 %v349, %v345
    %v458 = vpack.c.b16 %v350, %v346
    %v459 = vpack.c.b16 %v351, %v347
    %v460 = vpack.c.b16 %v356, %v352
    %v461 = vpack.c.b16 %v357, %v353
    %v462 = vpack.c.b16 %v358, %v354
    %v463 = vpack.c.b16 %v359, %v355
    %v464 = vpack.c.b16 %v364, %v360
    %v465 = vpack.c.b16 %v365, %v361
    %v466 = vpack.c.b16 %v366, %v362
    %v467 = vpack.c.b16 %v367, %v363
    %v468 = vpack.c.b16 %v372, %v368
    %v469 = vpack.c.b16 %v373, %v369
    %v470 = vpack.c.b16 %v374, %v370
    %v471 = vpack.c.b16 %v375, %v371
    %v472 = vpack.c.b16 %v380, %v376
    %v473 = vpack.c.b16 %v381, %v377
    %v474 = vpack.c.b16 %v382, %v378
    %v475 = vpack.c.b16 %v383, %v379
    %v476 = vpack.c.b16 %v388, %v384
    %v477 = vpack.c.b16 %v389, %v385
    %v478 = vpack.c.b16 %v390, %v386
    %v479 = vpack.c.b16 %v391, %v387
    %v480 = vpack.c.b16 %v396, %v392
    %v481 = vpack.c.b16 %v397, %v393
    %v482 = vpack.c.b16 %v398, %v394
    %v483 = vpack.c.b16 %v399, %v395
    %v484 = vpack.c.b16 %v404, %v400
    %v485 = vpack.c.b16 %v405, %v401
    %v486 = vpack.c.b16 %v406, %v402
    %v487 = vpack.c.b16 %v407, %v403
    %v488 = vpack.c.b16 %v412, %v408
    %v489 = vpack.c.b16 %v413, %v409
    %v490 = vpack.c.b16 %v414, %v410
    %v491 = vpack.c.b16 %v415, %v411
    %v492 = vpack.c.b16 %v420, %v416
    %v493 = vpack.c.b16 %v421, %v417
    %v494 = vpack.c.b16 %v422, %v418
    %v495 = vpack.c.b16 %v423, %v419
    %v496 = vpack.c.b16 %v428, %v424
    %v497 = vpack.c.b16 %v429, %v425
    %v498 = vpack.c.b16 %v430, %v426
    %v499 = vpack.c.b16 %v431, %v427
    %v500 = vpack.c.b16 %v436, %v432
    %v501 = vpack.c.b16 %v437, %v433
    %v502 = vpack.c.b16 %v438, %v434
    %v503 = vpack.c.b16 %v439, %v435
    %568 = vmatpush.bf16.msra.mxu0 %v468
    %569 = vmatpush.bf16.msra.mxu0 %v464
    %570 = vmatpush.bf16.msra.mxu0 %v460
    %571 = vmatpush.bf16.msra.mxu0 %v456
    %572 = vmatpush.bf16.msra.mxu0 %v452
    %573 = vmatpush.bf16.msra.mxu0 %v448
    %574 = vmatpush.bf16.msra.mxu0 %v444
    %575 = vmatpush.bf16.msra.mxu0 %v440
    %576 = vmatmul.bf16.gmra.mxu0 %v182
    %v577 = vpop.f32.mrf.mxu0
    %v578 = vadd.f32 0.0, %v577
    %v579 = vpop.f32.mrf.mxu0
    %580 = vdwg.mxu0
    %581 = vmatpush.bf16.msra.mxu0 %v500
    %582 = vmatpush.bf16.msra.mxu0 %v496
    %583 = vmatpush.bf16.msra.mxu0 %v492
    %584 = vmatpush.bf16.msra.mxu0 %v488
    %585 = vmatpush.bf16.msra.mxu0 %v484
    %586 = vmatpush.bf16.msra.mxu0 %v480
    %587 = vmatpush.bf16.msra.mxu0 %v476
    %588 = vmatpush.bf16.msra.mxu0 %v472
    %589 = vmatmul.bf16.gmra.mxu0 %v183
    %v590 = vpop.f32.mrf.mxu0
    %v591 = vadd.f32 %v578, %v590
    %v592 = vpop.f32.mrf.mxu0
    %593 = vdwg.mxu0
    %594 = vmatpush.bf16.msra.mxu0 %v469
    %595 = vmatpush.bf16.msra.mxu0 %v465
    %596 = vmatpush.bf16.msra.mxu0 %v461
    %597 = vmatpush.bf16.msra.mxu0 %v457
    %598 = vmatpush.bf16.msra.mxu0 %v453
    %599 = vmatpush.bf16.msra.mxu0 %v449
    %600 = vmatpush.bf16.msra.mxu0 %v445
    %601 = vmatpush.bf16.msra.mxu0 %v441
    %602 = vmatmul.bf16.gmra.mxu0 %v182
    %v603 = vpop.f32.mrf.mxu0
    %v604 = vadd.f32 0.0, %v603
    %v605 = vpop.f32.mrf.mxu0
    %606 = vdwg.mxu0
    %607 = vmatpush.bf16.msra.mxu0 %v501
    %608 = vmatpush.bf16.msra.mxu0 %v497
    %609 = vmatpush.bf16.msra.mxu0 %v493
    %610 = vmatpush.bf16.msra.mxu0 %v489
    %611 = vmatpush.bf16.msra.mxu0 %v485
    %612 = vmatpush.bf16.msra.mxu0 %v481
    %613 = vmatpush.bf16.msra.mxu0 %v477
    %614 = vmatpush.bf16.msra.mxu0 %v473
    %615 = vmatmul.bf16.gmra.mxu0 %v183
    %v616 = vpop.f32.mrf.mxu0
    %v617 = vadd.f32 %v604, %v616
    %v618 = vpop.f32.mrf.mxu0
    %619 = vdwg.mxu0
    %620 = vmatpush.bf16.msra.mxu0 %v470
    %621 = vmatpush.bf16.msra.mxu0 %v466
    %622 = vmatpush.bf16.msra.mxu0 %v462
    %623 = vmatpush.bf16.msra.mxu0 %v458
    %624 = vmatpush.bf16.msra.mxu0 %v454
    %625 = vmatpush.bf16.msra.mxu0 %v450
    %626 = vmatpush.bf16.msra.mxu0 %v446
    %627 = vmatpush.bf16.msra.mxu0 %v442
    %628 = vmatmul.bf16.gmra.mxu0 %v182
    %v629 = vpop.f32.mrf.mxu0
    %v630 = vadd.f32 0.0, %v629
    %v631 = vpop.f32.mrf.mxu0
    %632 = vdwg.mxu0
    %633 = vmatpush.bf16.msra.mxu0 %v502
    %634 = vmatpush.bf16.msra.mxu0 %v498
    %635 = vmatpush.bf16.msra.mxu0 %v494
    %636 = vmatpush.bf16.msra.mxu0 %v490
    %637 = vmatpush.bf16.msra.mxu0 %v486
    %638 = vmatpush.bf16.msra.mxu0 %v482
    %639 = vmatpush.bf16.msra.mxu0 %v478
    %640 = vmatpush.bf16.msra.mxu0 %v474
    %641 = vmatmul.bf16.gmra.mxu0 %v183
    %v642 = vpop.f32.mrf.mxu0
    %v643 = vadd.f32 %v630, %v642
    %v644 = vpop.f32.mrf.mxu0
    %645 = vdwg.mxu0
    %646 = vmatpush.bf16.msra.mxu0 %v471
    %647 = vmatpush.bf16.msra.mxu0 %v467
    %648 = vmatpush.bf16.msra.mxu0 %v463
    %649 = vmatpush.bf16.msra.mxu0 %v459
    %650 = vmatpush.bf16.msra.mxu0 %v455
    %651 = vmatpush.bf16.msra.mxu0 %v451
    %652 = vmatpush.bf16.msra.mxu0 %v447
    %653 = vmatpush.bf16.msra.mxu0 %v443
    %654 = vmatmul.bf16.gmra.mxu0 %v182
    %v655 = vpop.f32.mrf.mxu0
    %v656 = vadd.f32 0.0, %v655
    %v657 = vpop.f32.mrf.mxu0
    %658 = vdwg.mxu0
    %659 = vmatpush.bf16.msra.mxu0 %v503
    %660 = vmatpush.bf16.msra.mxu0 %v499
    %661 = vmatpush.bf16.msra.mxu0 %v495
    %662 = vmatpush.bf16.msra.mxu0 %v491
    %663 = vmatpush.bf16.msra.mxu0 %v487
    %664 = vmatpush.bf16.msra.mxu0 %v483
    %665 = vmatpush.bf16.msra.mxu0 %v479
    %666 = vmatpush.bf16.msra.mxu0 %v475
    %667 = vmatmul.bf16.gmra.mxu0 %v183
    %v668 = vpop.f32.mrf.mxu0
    %v669 = vadd.f32 %v656, %v668
    %v670 = vpop.f32.mrf.mxu0
    %671 = vdwg.mxu0
    %v672 = vmax.f32 %v591, %v617
    %v673 = vmax.f32 %v643, %v669
    %v674 = vmax.f32 %v672, %v673
    %v675 = vld [vmem:[%s4] sm:$0x1]
    %v677 = vperm.slane %v675, 0
    %v679 = vadd.f32 %v674, %v677
    %v680 = vmax.f32 %v679, 0.0
    %v681 = vpack.c.bf16 %v680, %v680
    %v682 = vld [vmem:[%s5] sm:$0xff]
    %v683 = vld [vmem:[%s5 + $0x8] sm:$0xff]
    %v684 = vld [vmem:[%s5 + $0x10] sm:$0xff]
    %v685 = vld [vmem:[%s5 + $0x18] sm:$0xff]
    %v686 = vld [vmem:[%s5 + $0x20] sm:$0xff]
    %v687 = vld [vmem:[%s5 + $0x28] sm:$0xff]
    %v688 = vld [vmem:[%s5 + $0x30] sm:$0xff]
    %v689 = vld [vmem:[%s5 + $0x38] sm:$0xff]
    %v690 = vld [vmem:[%s5 + $0x40] sm:$0xff]
    %v691 = vld [vmem:[%s5 + $0x48] sm:$0xff]
    %v692 = vld [vmem:[%s5 + $0x50] sm:$0xff]
    %v693 = vld [vmem:[%s5 + $0x58] sm:$0xff]
    %v694 = vld [vmem:[%s5 + $0x60] sm:$0xff]
    %v695 = vld [vmem:[%s5 + $0x68] sm:$0xff]
    %v696 = vld [vmem:[%s5 + $0x70] sm:$0xff]
    %v697 = vld [vmem:[%s5 + $0x78] sm:$0xff]
    %v698 = vld [vmem:[%s5 + $0x80] sm:$0xff]
    %v699 = vld [vmem:[%s5 + $0x88] sm:$0xff]
    %v700 = vld [vmem:[%s5 + $0x90] sm:$0xff]
    %v701 = vld [vmem:[%s5 + $0x98] sm:$0xff]
    %v702 = vld [vmem:[%s5 + $0xa0] sm:$0xff]
    %v703 = vld [vmem:[%s5 + $0xa8] sm:$0xff]
    %v704 = vld [vmem:[%s5 + $0xb0] sm:$0xff]
    %v705 = vld [vmem:[%s5 + $0xb8] sm:$0xff]
    %v706 = vld [vmem:[%s5 + $0xc0] sm:$0xff]
    %v707 = vld [vmem:[%s5 + $0xc8] sm:$0xff]
    %v708 = vld [vmem:[%s5 + $0xd0] sm:$0xff]
    %v709 = vld [vmem:[%s5 + $0xd8] sm:$0xff]
    %v710 = vld [vmem:[%s5 + $0xe0] sm:$0xff]
    %v711 = vld [vmem:[%s5 + $0xe8] sm:$0xff]
    %v712 = vld [vmem:[%s5 + $0xf0] sm:$0xff]
    %v713 = vld [vmem:[%s5 + $0xf8] sm:$0xff]
    %v746 = vunpack.c.l.b16 %v682
    %v747 = vunpack.c.h.b16 %v682
    %v748 = vunpack.c.l.b16 %v683
    %v749 = vunpack.c.h.b16 %v683
    %v750 = vunpack.c.l.b16 %v684
    %v751 = vunpack.c.h.b16 %v684
    %v752 = vunpack.c.l.b16 %v685
    %v753 = vunpack.c.h.b16 %v685
    %v754 = vunpack.c.l.b16 %v686
    %v755 = vunpack.c.h.b16 %v686
    %v756 = vunpack.c.l.b16 %v687
    %v757 = vunpack.c.h.b16 %v687
    %v758 = vunpack.c.l.b16 %v688
    %v759 = vunpack.c.h.b16 %v688
    %v760 = vunpack.c.l.b16 %v689
    %v761 = vunpack.c.h.b16 %v689
    %v762 = vunpack.c.l.b16 %v690
    %v763 = vunpack.c.h.b16 %v690
    %v764 = vunpack.c.l.b16 %v691
    %v765 = vunpack.c.h.b16 %v691
    %v766 = vunpack.c.l.b16 %v692
    %v767 = vunpack.c.h.b16 %v692
    %v768 = vunpack.c.l.b16 %v693
    %v769 = vunpack.c.h.b16 %v693
    %v770 = vunpack.c.l.b16 %v694
    %v771 = vunpack.c.h.b16 %v694
    %v772 = vunpack.c.l.b16 %v695
    %v773 = vunpack.c.h.b16 %v695
    %v774 = vunpack.c.l.b16 %v696
    %v775 = vunpack.c.h.b16 %v696
    %v776 = vunpack.c.l.b16 %v697
    %v777 = vunpack.c.h.b16 %v697
    %v778 = vunpack.c.l.b16 %v698
    %v779 = vunpack.c.h.b16 %v698
    %v780 = vunpack.c.l.b16 %v699
    %v781 = vunpack.c.h.b16 %v699
    %v782 = vunpack.c.l.b16 %v700
    %v783 = vunpack.c.h.b16 %v700
    %v784 = vunpack.c.l.b16 %v701
    %v785 = vunpack.c.h.b16 %v701
    %v786 = vunpack.c.l.b16 %v702
    %v787 = vunpack.c.h.b16 %v702
    %v788 = vunpack.c.l.b16 %v703
    %v789 = vunpack.c.h.b16 %v703
    %v790 = vunpack.c.l.b16 %v704
    %v791 = vunpack.c.h.b16 %v704
    %v792 = vunpack.c.l.b16 %v705
    %v793 = vunpack.c.h.b16 %v705
    %v794 = vunpack.c.l.b16 %v706
    %v795 = vunpack.c.h.b16 %v706
    %v796 = vunpack.c.l.b16 %v707
    %v797 = vunpack.c.h.b16 %v707
    %v798 = vunpack.c.l.b16 %v708
    %v799 = vunpack.c.h.b16 %v708
    %v800 = vunpack.c.l.b16 %v709
    %v801 = vunpack.c.h.b16 %v709
    %v802 = vunpack.c.l.b16 %v710
    %v803 = vunpack.c.h.b16 %v710
    %v804 = vunpack.c.l.b16 %v711
    %v805 = vunpack.c.h.b16 %v711
    %v806 = vunpack.c.l.b16 %v712
    %v807 = vunpack.c.h.b16 %v712
    %v808 = vunpack.c.l.b16 %v713
    %v809 = vunpack.c.h.b16 %v713
    %v810 = vpack.c.b16 %v750, %v746
    %v811 = vpack.c.b16 %v751, %v747
    %v812 = vpack.c.b16 %v752, %v748
    %v813 = vpack.c.b16 %v753, %v749
    %v814 = vpack.c.b16 %v758, %v754
    %v815 = vpack.c.b16 %v759, %v755
    %v816 = vpack.c.b16 %v760, %v756
    %v817 = vpack.c.b16 %v761, %v757
    %v818 = vpack.c.b16 %v766, %v762
    %v819 = vpack.c.b16 %v767, %v763
    %v820 = vpack.c.b16 %v768, %v764
    %v821 = vpack.c.b16 %v769, %v765
    %v822 = vpack.c.b16 %v774, %v770
    %v823 = vpack.c.b16 %v775, %v771
    %v824 = vpack.c.b16 %v776, %v772
    %v825 = vpack.c.b16 %v777, %v773
    %v826 = vpack.c.b16 %v782, %v778
    %v827 = vpack.c.b16 %v783, %v779
    %v828 = vpack.c.b16 %v784, %v780
    %v829 = vpack.c.b16 %v785, %v781
    %v830 = vpack.c.b16 %v790, %v786
    %v831 = vpack.c.b16 %v791, %v787
    %v832 = vpack.c.b16 %v792, %v788
    %v833 = vpack.c.b16 %v793, %v789
    %v834 = vpack.c.b16 %v798, %v794
    %v835 = vpack.c.b16 %v799, %v795
    %v836 = vpack.c.b16 %v800, %v796
    %v837 = vpack.c.b16 %v801, %v797
    %v838 = vpack.c.b16 %v806, %v802
    %v839 = vpack.c.b16 %v807, %v803
    %v840 = vpack.c.b16 %v808, %v804
    %v841 = vpack.c.b16 %v809, %v805
    %874 = vmatpush.bf16.msra.mxu0 %v838
    %875 = vmatpush.bf16.msra.mxu0 %v834
    %876 = vmatpush.bf16.msra.mxu0 %v830
    %877 = vmatpush.bf16.msra.mxu0 %v826
    %878 = vmatpush.bf16.msra.mxu0 %v822
    %879 = vmatpush.bf16.msra.mxu0 %v818
    %880 = vmatpush.bf16.msra.mxu0 %v814
    %881 = vmatpush.bf16.msra.mxu0 %v810
    %882 = vmatmul.bf16.gmra.mxu0 %v681
    %v883 = vpop.f32.mrf.mxu0
    %v884 = vadd.f32 0.0, %v883
    %v885 = vpop.f32.mrf.mxu0
    %886 = vdwg.mxu0
    %887 = vmatpush.bf16.msra.mxu0 %v839
    %888 = vmatpush.bf16.msra.mxu0 %v835
    %889 = vmatpush.bf16.msra.mxu0 %v831
    %890 = vmatpush.bf16.msra.mxu0 %v827
    %891 = vmatpush.bf16.msra.mxu0 %v823
    %892 = vmatpush.bf16.msra.mxu0 %v819
    %893 = vmatpush.bf16.msra.mxu0 %v815
    %894 = vmatpush.bf16.msra.mxu0 %v811
    %895 = vmatmul.bf16.gmra.mxu0 %v681
    %v896 = vpop.f32.mrf.mxu0
    %v897 = vadd.f32 0.0, %v896
    %v898 = vpop.f32.mrf.mxu0
    %899 = vdwg.mxu0
    %900 = vmatpush.bf16.msra.mxu0 %v840
    %901 = vmatpush.bf16.msra.mxu0 %v836
    %902 = vmatpush.bf16.msra.mxu0 %v832
    %903 = vmatpush.bf16.msra.mxu0 %v828
    %904 = vmatpush.bf16.msra.mxu0 %v824
    %905 = vmatpush.bf16.msra.mxu0 %v820
    %906 = vmatpush.bf16.msra.mxu0 %v816
    %907 = vmatpush.bf16.msra.mxu0 %v812
    %908 = vmatmul.bf16.gmra.mxu0 %v681
    %v909 = vpop.f32.mrf.mxu0
    %v910 = vadd.f32 0.0, %v909
    %v911 = vpop.f32.mrf.mxu0
    %912 = vdwg.mxu0
    %913 = vmatpush.bf16.msra.mxu0 %v841
    %914 = vmatpush.bf16.msra.mxu0 %v837
    %915 = vmatpush.bf16.msra.mxu0 %v833
    %916 = vmatpush.bf16.msra.mxu0 %v829
    %917 = vmatpush.bf16.msra.mxu0 %v825
    %918 = vmatpush.bf16.msra.mxu0 %v821
    %919 = vmatpush.bf16.msra.mxu0 %v817
    %920 = vmatpush.bf16.msra.mxu0 %v813
    %921 = vmatmul.bf16.gmra.mxu0 %v681
    %v922 = vpop.f32.mrf.mxu0
    %v923 = vadd.f32 0.0, %v922
    %v924 = vpop.f32.mrf.mxu0
    %925 = vdwg.mxu0
    %v926 = vmax.f32 %v884, %v897
    %v927 = vmax.f32 %v910, %v923
    %v928 = vmax.f32 %v926, %v927
    %v929 = vld [vmem:[%s6] sm:$0x1]
    %v931 = vperm.slane %v929, 0
    %v933 = vadd.f32 %v928, %v931
    %v934 = vmax.f32 %v933, 0.0
    %v935 = vpack.c.bf16 %v934, %v934
    %v936 = vld [vmem:[%s7] sm:$0xff]
    %v937 = vld [vmem:[%s7 + $0x8] sm:$0xff]
    %v938 = vld [vmem:[%s7 + $0x10] sm:$0xff]
    %v939 = vld [vmem:[%s7 + $0x18] sm:$0xff]
    %v940 = vld [vmem:[%s7 + $0x20] sm:$0xff]
    %v941 = vld [vmem:[%s7 + $0x28] sm:$0xff]
    %v942 = vld [vmem:[%s7 + $0x30] sm:$0xff]
    %v943 = vld [vmem:[%s7 + $0x38] sm:$0xff]
    %v944 = vld [vmem:[%s7 + $0x40] sm:$0xff]
    %v945 = vld [vmem:[%s7 + $0x48] sm:$0xff]
    %v946 = vld [vmem:[%s7 + $0x50] sm:$0xff]
    %v947 = vld [vmem:[%s7 + $0x58] sm:$0xff]
    %v948 = vld [vmem:[%s7 + $0x60] sm:$0xff]
    %v949 = vld [vmem:[%s7 + $0x68] sm:$0xff]
    %v950 = vld [vmem:[%s7 + $0x70] sm:$0xff]
    %v951 = vld [vmem:[%s7 + $0x78] sm:$0xff]
    %v952 = vld [vmem:[%s7 + $0x80] sm:$0xff]
    %v953 = vld [vmem:[%s7 + $0x88] sm:$0xff]
    %v954 = vld [vmem:[%s7 + $0x90] sm:$0xff]
    %v955 = vld [vmem:[%s7 + $0x98] sm:$0xff]
    %v956 = vld [vmem:[%s7 + $0xa0] sm:$0xff]
    %v957 = vld [vmem:[%s7 + $0xa8] sm:$0xff]
    %v958 = vld [vmem:[%s7 + $0xb0] sm:$0xff]
    %v959 = vld [vmem:[%s7 + $0xb8] sm:$0xff]
    %v960 = vld [vmem:[%s7 + $0xc0] sm:$0xff]
    %v961 = vld [vmem:[%s7 + $0xc8] sm:$0xff]
    %v962 = vld [vmem:[%s7 + $0xd0] sm:$0xff]
    %v963 = vld [vmem:[%s7 + $0xd8] sm:$0xff]
    %v964 = vld [vmem:[%s7 + $0xe0] sm:$0xff]
    %v965 = vld [vmem:[%s7 + $0xe8] sm:$0xff]
    %v966 = vld [vmem:[%s7 + $0xf0] sm:$0xff]
    %v967 = vld [vmem:[%s7 + $0xf8] sm:$0xff]
    %v968 = vld [vmem:[%s8] sm:$0xf]
    %v970 = vperm.slane %v968, 0
    %v971 = vperm.slane %v968, 1
    %v972 = vperm.slane %v968, 2
    %v973 = vperm.slane %v968, 3
    %v1010 = vunpack.c.l.b16 %v936
    %v1011 = vunpack.c.h.b16 %v936
    %v1012 = vunpack.c.l.b16 %v937
    %v1013 = vunpack.c.h.b16 %v937
    %v1014 = vunpack.c.l.b16 %v938
    %v1015 = vunpack.c.h.b16 %v938
    %v1016 = vunpack.c.l.b16 %v939
    %v1017 = vunpack.c.h.b16 %v939
    %v1018 = vunpack.c.l.b16 %v940
    %v1019 = vunpack.c.h.b16 %v940
    %v1020 = vunpack.c.l.b16 %v941
    %v1021 = vunpack.c.h.b16 %v941
    %v1022 = vunpack.c.l.b16 %v942
    %v1023 = vunpack.c.h.b16 %v942
    %v1024 = vunpack.c.l.b16 %v943
    %v1025 = vunpack.c.h.b16 %v943
    %v1026 = vunpack.c.l.b16 %v944
    %v1027 = vunpack.c.h.b16 %v944
    %v1028 = vunpack.c.l.b16 %v945
    %v1029 = vunpack.c.h.b16 %v945
    %v1030 = vunpack.c.l.b16 %v946
    %v1031 = vunpack.c.h.b16 %v946
    %v1032 = vunpack.c.l.b16 %v947
    %v1033 = vunpack.c.h.b16 %v947
    %v1034 = vunpack.c.l.b16 %v948
    %v1035 = vunpack.c.h.b16 %v948
    %v1036 = vunpack.c.l.b16 %v949
    %v1037 = vunpack.c.h.b16 %v949
    %v1038 = vunpack.c.l.b16 %v950
    %v1039 = vunpack.c.h.b16 %v950
    %v1040 = vunpack.c.l.b16 %v951
    %v1041 = vunpack.c.h.b16 %v951
    %v1042 = vunpack.c.l.b16 %v952
    %v1043 = vunpack.c.h.b16 %v952
    %v1044 = vunpack.c.l.b16 %v953
    %v1045 = vunpack.c.h.b16 %v953
    %v1046 = vunpack.c.l.b16 %v954
    %v1047 = vunpack.c.h.b16 %v954
    %v1048 = vunpack.c.l.b16 %v955
    %v1049 = vunpack.c.h.b16 %v955
    %v1050 = vunpack.c.l.b16 %v956
    %v1051 = vunpack.c.h.b16 %v956
    %v1052 = vunpack.c.l.b16 %v957
    %v1053 = vunpack.c.h.b16 %v957
    %v1054 = vunpack.c.l.b16 %v958
    %v1055 = vunpack.c.h.b16 %v958
    %v1056 = vunpack.c.l.b16 %v959
    %v1057 = vunpack.c.h.b16 %v959
    %v1058 = vunpack.c.l.b16 %v960
    %v1059 = vunpack.c.h.b16 %v960
    %v1060 = vunpack.c.l.b16 %v961
    %v1061 = vunpack.c.h.b16 %v961
    %v1062 = vunpack.c.l.b16 %v962
    %v1063 = vunpack.c.h.b16 %v962
    %v1064 = vunpack.c.l.b16 %v963
    %v1065 = vunpack.c.h.b16 %v963
    %v1066 = vunpack.c.l.b16 %v964
    %v1067 = vunpack.c.h.b16 %v964
    %v1068 = vunpack.c.l.b16 %v965
    %v1069 = vunpack.c.h.b16 %v965
    %v1070 = vunpack.c.l.b16 %v966
    %v1071 = vunpack.c.h.b16 %v966
    %v1072 = vunpack.c.l.b16 %v967
    %v1073 = vunpack.c.h.b16 %v967
    %v1074 = vpack.c.b16 %v1014, %v1010
    %v1075 = vpack.c.b16 %v1015, %v1011
    %v1076 = vpack.c.b16 %v1016, %v1012
    %v1077 = vpack.c.b16 %v1017, %v1013
    %v1078 = vpack.c.b16 %v1022, %v1018
    %v1079 = vpack.c.b16 %v1023, %v1019
    %v1080 = vpack.c.b16 %v1024, %v1020
    %v1081 = vpack.c.b16 %v1025, %v1021
    %v1082 = vpack.c.b16 %v1030, %v1026
    %v1083 = vpack.c.b16 %v1031, %v1027
    %v1084 = vpack.c.b16 %v1032, %v1028
    %v1085 = vpack.c.b16 %v1033, %v1029
    %v1086 = vpack.c.b16 %v1038, %v1034
    %v1087 = vpack.c.b16 %v1039, %v1035
    %v1088 = vpack.c.b16 %v1040, %v1036
    %v1089 = vpack.c.b16 %v1041, %v1037
    %v1090 = vpack.c.b16 %v1046, %v1042
    %v1091 = vpack.c.b16 %v1047, %v1043
    %v1092 = vpack.c.b16 %v1048, %v1044
    %v1093 = vpack.c.b16 %v1049, %v1045
    %v1094 = vpack.c.b16 %v1054, %v1050
    %v1095 = vpack.c.b16 %v1055, %v1051
    %v1096 = vpack.c.b16 %v1056, %v1052
    %v1097 = vpack.c.b16 %v1057, %v1053
    %v1098 = vpack.c.b16 %v1062, %v1058
    %v1099 = vpack.c.b16 %v1063, %v1059
    %v1100 = vpack.c.b16 %v1064, %v1060
    %v1101 = vpack.c.b16 %v1065, %v1061
    %v1102 = vpack.c.b16 %v1070, %v1066
    %v1103 = vpack.c.b16 %v1071, %v1067
    %v1104 = vpack.c.b16 %v1072, %v1068
    %v1105 = vpack.c.b16 %v1073, %v1069
    %1138 = vmatpush.bf16.msra.mxu0 %v1102
    %1139 = vmatpush.bf16.msra.mxu0 %v1098
    %1140 = vmatpush.bf16.msra.mxu0 %v1094
    %1141 = vmatpush.bf16.msra.mxu0 %v1090
    %1142 = vmatpush.bf16.msra.mxu0 %v1086
    %1143 = vmatpush.bf16.msra.mxu0 %v1082
    %1144 = vmatpush.bf16.msra.mxu0 %v1078
    %1145 = vmatpush.bf16.msra.mxu0 %v1074
    %1146 = vmatmul.bf16.gmra.mxu0 %v935
    %v1147 = vpop.f32.mrf.mxu0
    %v1148 = vadd.f32 %v970, %v1147
    %v1149 = vpop.f32.mrf.mxu0
    %1150 = vdwg.mxu0
    %1151 = vmatpush.bf16.msra.mxu0 %v1103
    %1152 = vmatpush.bf16.msra.mxu0 %v1099
    %1153 = vmatpush.bf16.msra.mxu0 %v1095
    %1154 = vmatpush.bf16.msra.mxu0 %v1091
    %1155 = vmatpush.bf16.msra.mxu0 %v1087
    %1156 = vmatpush.bf16.msra.mxu0 %v1083
    %1157 = vmatpush.bf16.msra.mxu0 %v1079
    %1158 = vmatpush.bf16.msra.mxu0 %v1075
    %1159 = vmatmul.bf16.gmra.mxu0 %v935
    %v1160 = vpop.f32.mrf.mxu0
    %v1161 = vadd.f32 %v971, %v1160
    %v1162 = vpop.f32.mrf.mxu0
    %1163 = vdwg.mxu0
    %1164 = vmatpush.bf16.msra.mxu0 %v1104
    %1165 = vmatpush.bf16.msra.mxu0 %v1100
    %1166 = vmatpush.bf16.msra.mxu0 %v1096
    %1167 = vmatpush.bf16.msra.mxu0 %v1092
    %1168 = vmatpush.bf16.msra.mxu0 %v1088
    %1169 = vmatpush.bf16.msra.mxu0 %v1084
    %1170 = vmatpush.bf16.msra.mxu0 %v1080
    %1171 = vmatpush.bf16.msra.mxu0 %v1076
    %1172 = vmatmul.bf16.gmra.mxu0 %v935
    %v1173 = vpop.f32.mrf.mxu0
    %v1174 = vadd.f32 %v972, %v1173
    %v1175 = vpop.f32.mrf.mxu0
    %1176 = vdwg.mxu0
    %1177 = vmatpush.bf16.msra.mxu0 %v1105
    %1178 = vmatpush.bf16.msra.mxu0 %v1101
    %1179 = vmatpush.bf16.msra.mxu0 %v1097
    %1180 = vmatpush.bf16.msra.mxu0 %v1093
    %1181 = vmatpush.bf16.msra.mxu0 %v1089
    %1182 = vmatpush.bf16.msra.mxu0 %v1085
    %1183 = vmatpush.bf16.msra.mxu0 %v1081
    %1184 = vmatpush.bf16.msra.mxu0 %v1077
    %1185 = vmatmul.bf16.gmra.mxu0 %v935
    %v1186 = vpop.f32.mrf.mxu0
    %v1187 = vadd.f32 %v973, %v1186
    %v1188 = vpop.f32.mrf.mxu0
    %1189 = vdwg.mxu0
    %v1190 = vmax.f32 %v1148, 0.0
    %v1191 = vmax.f32 %v1161, 0.0
    %v1192 = vmax.f32 %v1174, 0.0
    %v1193 = vmax.f32 %v1187, 0.0
    %v1194 = vpack.c.bf16 %v1190, %v1190
    %v1195 = vpack.c.bf16 %v1191, %v1191
    %v1196 = vpack.c.bf16 %v1192, %v1192
    %v1197 = vpack.c.bf16 %v1193, %v1193
    %v1198 = vld [vmem:[%s9] sm:$0xf]
    %v1199 = vld [vmem:[%s9 + $0x4] sm:$0xf]
    %v1200 = vld [vmem:[%s9 + $0x8] sm:$0xf]
    %v1201 = vld [vmem:[%s9 + $0xc] sm:$0xf]
    %v1202 = vld [vmem:[%s9 + $0x10] sm:$0xf]
    %v1203 = vld [vmem:[%s9 + $0x14] sm:$0xf]
    %v1204 = vld [vmem:[%s9 + $0x18] sm:$0xf]
    %v1205 = vld [vmem:[%s9 + $0x1c] sm:$0xf]
    %v1206 = vld [vmem:[%s9 + $0x20] sm:$0xf]
    %v1207 = vld [vmem:[%s9 + $0x24] sm:$0xf]
    %v1208 = vld [vmem:[%s9 + $0x28] sm:$0xf]
    %v1209 = vld [vmem:[%s9 + $0x2c] sm:$0xf]
    %v1210 = vld [vmem:[%s9 + $0x30] sm:$0xf]
    %v1211 = vld [vmem:[%s9 + $0x34] sm:$0xf]
    %v1212 = vld [vmem:[%s9 + $0x38] sm:$0xf]
    %v1213 = vld [vmem:[%s9 + $0x3c] sm:$0xf]
    %v1214 = vld [vmem:[%s9 + $0x40] sm:$0xf]
    %v1215 = vld [vmem:[%s9 + $0x44] sm:$0xf]
    %v1216 = vld [vmem:[%s9 + $0x48] sm:$0xf]
    %v1217 = vld [vmem:[%s9 + $0x4c] sm:$0xf]
    %v1218 = vld [vmem:[%s9 + $0x50] sm:$0xf]
    %v1219 = vld [vmem:[%s9 + $0x54] sm:$0xf]
    %v1220 = vld [vmem:[%s9 + $0x58] sm:$0xf]
    %v1221 = vld [vmem:[%s9 + $0x5c] sm:$0xf]
    %v1222 = vld [vmem:[%s9 + $0x60] sm:$0xf]
    %v1223 = vld [vmem:[%s9 + $0x64] sm:$0xf]
    %v1224 = vld [vmem:[%s9 + $0x68] sm:$0xf]
    %v1225 = vld [vmem:[%s9 + $0x6c] sm:$0xf]
    %v1226 = vld [vmem:[%s9 + $0x70] sm:$0xf]
    %v1227 = vld [vmem:[%s9 + $0x74] sm:$0xf]
    %v1228 = vld [vmem:[%s9 + $0x78] sm:$0xf]
    %v1229 = vld [vmem:[%s9 + $0x7c] sm:$0xf]
    %v1230 = vld [vmem:[%s9 + $0x80] sm:$0xf]
    %v1231 = vld [vmem:[%s9 + $0x84] sm:$0xf]
    %v1232 = vld [vmem:[%s9 + $0x88] sm:$0xf]
    %v1233 = vld [vmem:[%s9 + $0x8c] sm:$0xf]
    %v1234 = vld [vmem:[%s9 + $0x90] sm:$0xf]
    %v1235 = vld [vmem:[%s9 + $0x94] sm:$0xf]
    %v1236 = vld [vmem:[%s9 + $0x98] sm:$0xf]
    %v1237 = vld [vmem:[%s9 + $0x9c] sm:$0xf]
    %v1238 = vld [vmem:[%s9 + $0xa0] sm:$0xf]
    %v1239 = vld [vmem:[%s9 + $0xa4] sm:$0xf]
    %v1240 = vld [vmem:[%s9 + $0xa8] sm:$0xf]
    %v1241 = vld [vmem:[%s9 + $0xac] sm:$0xf]
    %v1242 = vld [vmem:[%s9 + $0xb0] sm:$0xf]
    %v1243 = vld [vmem:[%s9 + $0xb4] sm:$0xf]
    %v1244 = vld [vmem:[%s9 + $0xb8] sm:$0xf]
    %v1245 = vld [vmem:[%s9 + $0xbc] sm:$0xf]
    %v1246 = vld [vmem:[%s9 + $0xc0] sm:$0xf]
    %v1247 = vld [vmem:[%s9 + $0xc4] sm:$0xf]
    %v1248 = vld [vmem:[%s10] sm:$0x1]
    %v1250 = vperm.slane %v1248, 0
    %v1302 = vunpack.c.l.b16 %v1198
    %v1303 = vunpack.c.l.b16 %v1199
    %v1304 = vunpack.c.l.b16 %v1200
    %v1305 = vunpack.c.l.b16 %v1201
    %v1306 = vunpack.c.l.b16 %v1202
    %v1307 = vunpack.c.l.b16 %v1203
    %v1308 = vunpack.c.l.b16 %v1204
    %v1309 = vunpack.c.l.b16 %v1205
    %v1310 = vunpack.c.l.b16 %v1206
    %v1311 = vunpack.c.l.b16 %v1207
    %v1312 = vunpack.c.l.b16 %v1208
    %v1313 = vunpack.c.l.b16 %v1209
    %v1314 = vunpack.c.l.b16 %v1210
    %v1315 = vunpack.c.l.b16 %v1211
    %v1316 = vunpack.c.l.b16 %v1212
    %v1317 = vunpack.c.l.b16 %v1213
    %v1318 = vunpack.c.l.b16 %v1214
    %v1319 = vunpack.c.l.b16 %v1215
    %v1320 = vunpack.c.l.b16 %v1216
    %v1321 = vunpack.c.l.b16 %v1217
    %v1322 = vunpack.c.l.b16 %v1218
    %v1323 = vunpack.c.l.b16 %v1219
    %v1324 = vunpack.c.l.b16 %v1220
    %v1325 = vunpack.c.l.b16 %v1221
    %v1326 = vunpack.c.l.b16 %v1222
    %v1327 = vunpack.c.l.b16 %v1223
    %v1328 = vunpack.c.l.b16 %v1224
    %v1329 = vunpack.c.l.b16 %v1225
    %v1330 = vunpack.c.l.b16 %v1226
    %v1331 = vunpack.c.l.b16 %v1227
    %v1332 = vunpack.c.l.b16 %v1228
    %v1333 = vunpack.c.l.b16 %v1229
    %v1334 = vunpack.c.l.b16 %v1230
    %v1335 = vunpack.c.l.b16 %v1231
    %v1336 = vunpack.c.l.b16 %v1232
    %v1337 = vunpack.c.l.b16 %v1233
    %v1338 = vunpack.c.l.b16 %v1234
    %v1339 = vunpack.c.l.b16 %v1235
    %v1340 = vunpack.c.l.b16 %v1236
    %v1341 = vunpack.c.l.b16 %v1237
    %v1342 = vunpack.c.l.b16 %v1238
    %v1343 = vunpack.c.l.b16 %v1239
    %v1344 = vunpack.c.l.b16 %v1240
    %v1345 = vunpack.c.l.b16 %v1241
    %v1346 = vunpack.c.l.b16 %v1242
    %v1347 = vunpack.c.l.b16 %v1243
    %v1348 = vunpack.c.l.b16 %v1244
    %v1349 = vunpack.c.l.b16 %v1245
    %v1350 = vunpack.c.l.b16 %v1246
    %v1351 = vunpack.c.l.b16 %v1247
    %v1352 = vpack.c.b16 %v1303, %v1302
    %v1353 = vpack.c.b16 %v1305, %v1304
    %v1354 = vpack.c.b16 %v1307, %v1306
    %v1355 = vpack.c.b16 %v1309, %v1308
    %v1356 = vpack.c.b16 %v1311, %v1310
    %v1357 = vpack.c.b16 %v1313, %v1312
    %v1358 = vpack.c.b16 %v1315, %v1314
    %v1359 = vpack.c.b16 %v1317, %v1316
    %v1360 = vpack.c.b16 %v1319, %v1318
    %v1361 = vpack.c.b16 %v1321, %v1320
    %v1362 = vpack.c.b16 %v1323, %v1322
    %v1363 = vpack.c.b16 %v1325, %v1324
    %v1364 = vpack.c.b16 %v1327, %v1326
    %v1365 = vpack.c.b16 %v1329, %v1328
    %v1366 = vpack.c.b16 %v1331, %v1330
    %v1367 = vpack.c.b16 %v1333, %v1332
    %v1368 = vpack.c.b16 %v1335, %v1334
    %v1369 = vpack.c.b16 %v1337, %v1336
    %v1370 = vpack.c.b16 %v1339, %v1338
    %v1371 = vpack.c.b16 %v1341, %v1340
    %v1372 = vpack.c.b16 %v1343, %v1342
    %v1373 = vpack.c.b16 %v1345, %v1344
    %v1374 = vpack.c.b16 %v1347, %v1346
    %v1375 = vpack.c.b16 %v1349, %v1348
    %v1376 = vpack.c.b16 %v1351, %v1350
    %vm1402 = vcmask 130048
    %v1404 = vsel %vm1402, %v1197, 0
    %1406 = vmatpush.bf16.msra.mxu0 %v1359
    %1407 = vmatpush.bf16.msra.mxu0 %v1358
    %1408 = vmatpush.bf16.msra.mxu0 %v1357
    %1409 = vmatpush.bf16.msra.mxu0 %v1356
    %1410 = vmatpush.bf16.msra.mxu0 %v1355
    %1411 = vmatpush.bf16.msra.mxu0 %v1354
    %1412 = vmatpush.bf16.msra.mxu0 %v1353
    %1413 = vmatpush.bf16.msra.mxu0 %v1352
    %1414 = vmatmul.bf16.gmra.mxu0 %v1194
    %v1415 = vpop.f32.mrf.mxu0
    %v1416 = vadd.f32 %v1250, %v1415
    %v1417 = vpop.f32.mrf.mxu0
    %1418 = vdwg.mxu0
    %1419 = vmatpush.bf16.msra.mxu0 %v1367
    %1420 = vmatpush.bf16.msra.mxu0 %v1366
    %1421 = vmatpush.bf16.msra.mxu0 %v1365
    %1422 = vmatpush.bf16.msra.mxu0 %v1364
    %1423 = vmatpush.bf16.msra.mxu0 %v1363
    %1424 = vmatpush.bf16.msra.mxu0 %v1362
    %1425 = vmatpush.bf16.msra.mxu0 %v1361
    %1426 = vmatpush.bf16.msra.mxu0 %v1360
    %1427 = vmatmul.bf16.gmra.mxu0 %v1195
    %v1428 = vpop.f32.mrf.mxu0
    %v1429 = vadd.f32 %v1416, %v1428
    %v1430 = vpop.f32.mrf.mxu0
    %1431 = vdwg.mxu0
    %1432 = vmatpush.bf16.msra.mxu0 %v1375
    %1433 = vmatpush.bf16.msra.mxu0 %v1374
    %1434 = vmatpush.bf16.msra.mxu0 %v1373
    %1435 = vmatpush.bf16.msra.mxu0 %v1372
    %1436 = vmatpush.bf16.msra.mxu0 %v1371
    %1437 = vmatpush.bf16.msra.mxu0 %v1370
    %1438 = vmatpush.bf16.msra.mxu0 %v1369
    %1439 = vmatpush.bf16.msra.mxu0 %v1368
    %1440 = vmatmul.bf16.gmra.mxu0 %v1196
    %v1441 = vpop.f32.mrf.mxu0
    %v1442 = vadd.f32 %v1429, %v1441
    %v1443 = vpop.f32.mrf.mxu0
    %1444 = vdwg.mxu0
    %1445 = vmatpush.bf16.msra.mxu0 0
    %1446 = vmatpush.bf16.msra.mxu0 0
    %1447 = vmatpush.bf16.msra.mxu0 0
    %1448 = vmatpush.bf16.msra.mxu0 0
    %1449 = vmatpush.bf16.msra.mxu0 0
    %1450 = vmatpush.bf16.msra.mxu0 0
    %1451 = vmatpush.bf16.msra.mxu0 0
    %1452 = vmatpush.bf16.msra.mxu0 %v1376
    %1453 = vmatmul.bf16.gmra.mxu0 %v1404
    %v1454 = vpop.f32.mrf.mxu0
    %v1455 = vadd.f32 %v1442, %v1454
    %v1456 = vpop.f32.mrf.mxu0
    %1457 = vdwg.mxu0
    %v1458 = vmax.f32 %v1455, 0.0
    %1459 = vst [vmem:[%s14] sm:$0xff] %v1458
    %v1460 = vpack.c.bf16 %v1458, %v1458
    %v1461 = vld [vmem:[#allocation6] sm:$0xf]
    %v1462 = vld [vmem:[#allocation6 + $0x4] sm:$0xf]
    %v1463 = vld [vmem:[#allocation6 + $0x8] sm:$0xf]
    %v1464 = vld [vmem:[#allocation6 + $0xc] sm:$0xf]
    %v1465 = vld [vmem:[#allocation6 + $0x10] sm:$0xf]
    %v1466 = vld [vmem:[#allocation6 + $0x14] sm:$0xf]
    %v1467 = vld [vmem:[#allocation6 + $0x18] sm:$0xf]
    %v1468 = vld [vmem:[#allocation6 + $0x1c] sm:$0xf]
    %v1469 = vld [vmem:[#allocation6 + $0x20] sm:$0xf]
    %v1470 = vld [vmem:[#allocation6 + $0x24] sm:$0xf]
    %v1471 = vld [vmem:[#allocation6 + $0x28] sm:$0xf]
    %v1472 = vld [vmem:[#allocation6 + $0x2c] sm:$0xf]
    %v1473 = vld [vmem:[#allocation6 + $0x30] sm:$0xf]
    %v1474 = vld [vmem:[#allocation6 + $0x34] sm:$0xf]
    %v1475 = vld [vmem:[#allocation6 + $0x38] sm:$0xf]
    %v1476 = vld [vmem:[#allocation6 + $0x3c] sm:$0xf]
    %v1477 = vld [vmem:[%s12] sm:$0x1]
    %v1479 = vperm.slane %v1477, 0
    %v1497 = vunpack.c.l.b16 %v1461
    %v1498 = vunpack.c.l.b16 %v1462
    %v1499 = vunpack.c.l.b16 %v1463
    %v1500 = vunpack.c.l.b16 %v1464
    %v1501 = vunpack.c.l.b16 %v1465
    %v1502 = vunpack.c.l.b16 %v1466
    %v1503 = vunpack.c.l.b16 %v1467
    %v1504 = vunpack.c.l.b16 %v1468
    %v1505 = vunpack.c.l.b16 %v1469
    %v1506 = vunpack.c.l.b16 %v1470
    %v1507 = vunpack.c.l.b16 %v1471
    %v1508 = vunpack.c.l.b16 %v1472
    %v1509 = vunpack.c.l.b16 %v1473
    %v1510 = vunpack.c.l.b16 %v1474
    %v1511 = vunpack.c.l.b16 %v1475
    %v1512 = vunpack.c.l.b16 %v1476
    %v1513 = vpack.c.b16 %v1498, %v1497
    %v1514 = vpack.c.b16 %v1500, %v1499
    %v1515 = vpack.c.b16 %v1502, %v1501
    %v1516 = vpack.c.b16 %v1504, %v1503
    %v1517 = vpack.c.b16 %v1506, %v1505
    %v1518 = vpack.c.b16 %v1508, %v1507
    %v1519 = vpack.c.b16 %v1510, %v1509
    %v1520 = vpack.c.b16 %v1512, %v1511
    %1529 = vmatpush.bf16.msra.mxu0 %v1520
    %1530 = vmatpush.bf16.msra.mxu0 %v1519
    %1531 = vmatpush.bf16.msra.mxu0 %v1518
    %1532 = vmatpush.bf16.msra.mxu0 %v1517
    %1533 = vmatpush.bf16.msra.mxu0 %v1516
    %1534 = vmatpush.bf16.msra.mxu0 %v1515
    %1535 = vmatpush.bf16.msra.mxu0 %v1514
    %1536 = vmatpush.bf16.msra.mxu0 %v1513
    %1537 = vmatmul.bf16.gmra.mxu0 %v1460
    %v1538 = vpop.f32.mrf.mxu0
    %v1539 = vadd.f32 %v1479, %v1538
    %v1540 = vpop.f32.mrf.mxu0
    %1541 = vdwg.mxu0
    %1542 = vst [vmem:[%s13] sm:$0xff] %v1539
    // Predicated region
    $region66: #{game_net_forward.1} parent=1 // pred_check
      _
    $region67: #{game_net_forward.1} parent=1 // pred_check_branch
      %1544 = sbr.rel (0) target = $region69
    $region68: #{game_net_forward.1} parent=1 // pred_region
      _
    $region69: #{game_net_forward.1} parent=1 // pred_fallthru
      _
    // Predicated region
    $region70: #{game_net_forward.1} parent=1 // pred_check
      _
    $region71: #{game_net_forward.1} parent=1 // pred_check_branch
      %1546 = sbr.rel (0) target = $region73
    $region72: #{game_net_forward.1} parent=1 // pred_region
      _
    $region73: #{game_net_forward.1} parent=1 // pred_fallthru
      _
    // Predicated region
    $region74: #{game_net_forward.1} parent=1 // pred_check
      _
    $region75: #{game_net_forward.1} parent=1 // pred_check_branch
      %1548 = sbr.rel (0) target = $region77
    $region76: #{game_net_forward.1} parent=1 // pred_region
      _
    $region77: #{game_net_forward.1} parent=1 // pred_fallthru
      _
    // Predicated region
    $region78: #{game_net_forward.1} parent=1 // pred_check
      _
    $region79: #{game_net_forward.1} parent=1 // pred_check_branch
      %1550 = sbr.rel (0) target = $region81
    $region80: #{game_net_forward.1} parent=1 // pred_region
      _
    $region81: #{game_net_forward.1} parent=1 // pred_fallthru
      _
    %1551 = vsyncpa [#allocation3], 1
    %1552 = vsyncpa [#allocation5], 1

</llo_original>
